<compile_context>
chip_gen: v6e
topology: v6e:2x2x1
jax: 0.10.0
libtpu: 0.0.40
codegen_flags: <defaults>
</compile_context>

<pallas_src>
import functools

import numpy as np
import jax
import jax.numpy as jnp
from jax import lax
from jax.experimental import pallas as pl
from jax.experimental.pallas import tpu as pltpu


def _round_up(x, m):
    return (x + m - 1) // m * m


def _reward_kernel(xo_ref, xa_ref,
                   go_ref, bo_ref, ga_ref, ba_ref,
                   w1o_ref, w1a_ref, b1_ref,
                   w2_ref, b2_ref,
                   w3_ref, b3_ref,
                   w4_ref, b4_ref,
                   o_ref, *, inv_d):
    """One tile of rows: fused LayerNorm (over obs||act features) + 4-layer MLP."""
    xo = xo_ref[...].astype(jnp.float32)            # (TM, Do)
    xa = xa_ref[...].astype(jnp.float32)            # (TM, Da)

    # --- LayerNorm over the (virtually concatenated) feature dim, eps = 1e-5 ---
    # Single pass: sum and sum-of-squares over both pieces.
    sx = (jnp.sum(xo, axis=-1, keepdims=True)
          + jnp.sum(xa, axis=-1, keepdims=True))
    sxx = (jnp.sum(xo * xo, axis=-1, keepdims=True)
           + jnp.sum(xa * xa, axis=-1, keepdims=True))
    mean = sx * inv_d
    var = jnp.maximum(sxx * inv_d - mean * mean, 0.0)
    inv = lax.rsqrt(var + 1e-5)
    ho = (xo - mean) * inv * go_ref[...] + bo_ref[...]   # (TM, Do) f32
    ha = (xa - mean) * inv * ga_ref[...] + ba_ref[...]   # (TM, Da) f32

    # --- Feedforward: Linear->ReLU x3, bf16 matmuls with f32 accumulation ---
    # NOTE: splitting layer 1 into obs/act halves costs one extra K-block pass
    # when D <= 128; negligible for realistic hidden sizes (layer 1 << total).
    h = (jnp.dot(ho.astype(jnp.bfloat16), w1o_ref[...],
                 preferred_element_type=jnp.float32)
         + jnp.dot(ha.astype(jnp.bfloat16), w1a_ref[...],
                   preferred_element_type=jnp.float32)
         + b1_ref[...])
    h = jnp.maximum(h, 0.0)
    h = jnp.maximum(jnp.dot(h.astype(jnp.bfloat16), w2_ref[...],
                            preferred_element_type=jnp.float32) + b2_ref[...], 0.0)
    h = jnp.maximum(jnp.dot(h.astype(jnp.bfloat16), w3_ref[...],
                            preferred_element_type=jnp.float32) + b3_ref[...], 0.0)

    # --- Scalar head, lane-dense: (1, Hp) . (TM, Hp)^T -> (1, TM) ---
    # TODO(synk): verify via pl.lower_as_mlir that this trans_b contraction does
    # not materialize an XLU transpose of h; if it does, switch to a lane reduce.
    y = lax.dot_general(w4_ref[...], h.astype(jnp.bfloat16),
                        (((1,), (1,)), ((), ())),
                        preferred_element_type=jnp.float32) + b4_ref[...]
    o_ref[...] = y.astype(o_ref.dtype)


def prepare_reward_params(params, n_agents, obs_dim, act_dim,
                          weight_dtype=jnp.bfloat16):
    """One-time host-side param prep (permute to split order, pad H to 128, bf16).

    Permutes LN params / w1 rows from torch.cat order (per-agent [obs, act]) to
    split order ([all obs | all act]) so the fused obs/act streams reproduce
    torch.cat semantics exactly.
    """
    in_dim = obs_dim + act_dim
    D = n_agents * in_dim
    Do = n_agents * obs_dim
    Da = n_agents * act_dim
    H = params["w1"].shape[1]
    Hp = _round_up(H, 128)          # pad hidden dim to lane width

    base = np.arange(n_agents)[:, None] * in_dim
    obs_idx = (base + np.arange(obs_dim)[None, :]).reshape(-1)            # (Do,)
    act_idx = (base + obs_dim + np.arange(act_dim)[None, :]).reshape(-1)  # (Da,)

    gamma, beta = params["ln_gamma"], params["ln_beta"]

    def pad_c(w):
        return jnp.pad(w, ((0, 0), (0, Hp - w.shape[1])))

    def pad_r(w):
        return jnp.pad(w, ((0, Hp - w.shape[0]), (0, 0)))

    w1 = params["w1"]
    prep = {
        "g_obs": gamma[obs_idx].reshape(1, Do).astype(jnp.float32),
        "g_act": gamma[act_idx].reshape(1, Da).astype(jnp.float32),
        "b_obs": beta[obs_idx].reshape(1, Do).astype(jnp.float32),
        "b_act": beta[act_idx].reshape(1, Da).astype(jnp.float32),
        # zero-padded columns/rows keep results exact; bf16 storage halves VMEM
        # and gives native-rate MXU matmuls.
        # TODO(synk): on v7x, w2/w3 could additionally be stored fp8 if the
        # accuracy budget allows.
        "w1_obs": pad_c(w1[obs_idx, :]).astype(weight_dtype),   # (Do, Hp)
        "w1_act": pad_c(w1[act_idx, :]).astype(weight_dtype),   # (Da, Hp)
        "b1": jnp.pad(params["b1"], (0, Hp - H)).reshape(1, Hp).astype(jnp.float32),
        "w2": pad_c(pad_r(params["w2"])).astype(weight_dtype),  # (Hp, Hp)
        "b2": jnp.pad(params["b2"], (0, Hp - H)).reshape(1, Hp).astype(jnp.float32),
        "w3": pad_c(pad_r(params["w3"])).astype(weight_dtype),  # (Hp, Hp)
        "b3": jnp.pad(params["b3"], (0, Hp - H)).reshape(1, Hp).astype(jnp.float32),
        "w4": pad_r(params["w4"]).reshape(1, Hp).astype(weight_dtype),  # (1, Hp)
        "b4": params["b4"].reshape(1, 1).astype(jnp.float32),
        "D": D, "Do": Do, "Da": Da, "Hp": Hp,
    }
    return prep


def _tpu_defaults():
    """Generation-aware (tile_m, vmem_limit_bytes) defaults."""
    vmem_cap = 64 * 1024 * 1024        # conservative: v7x per-TC VMEM
    try:
        info = pltpu.get_tpu_info()
        cap = getattr(info, "vmem_capacity_bytes", None)
        if cap:
            vmem_cap = int(cap)
    except Exception:
        pass
    if vmem_cap >= 96 * 1024 * 1024:   # v5e / v6e: 128 MiB VMEM
        return 1024, 100 * 1024 * 1024
    return 512, 48 * 1024 * 1024       # v7x: 64 MiB/TC


def reward_estimator_forward(obss, actions, prep, *, tile_m=None,
                             vmem_limit_bytes=None):
    """obss: (..., n_agents, obs_dim), actions: (..., n_agents, act_dim) -> (..., 1)."""
    def_tm, def_vmem = _tpu_defaults()
    tile_m = def_tm if tile_m is None else tile_m
    vmem_limit_bytes = def_vmem if vmem_limit_bytes is None else vmem_limit_bytes
    tile_m = _round_up(max(tile_m, 128), 128)

    lead = obss.shape[:-2]
    Do, Da, D = prep["Do"], prep["Da"], prep["D"]

    # Stream obs/act separately (concat is fused inside the kernel; no HBM
    # round trip for the concatenated tensor).
    x_obs = obss.reshape(-1, Do)
    x_act = actions.reshape(-1, Da)
    B = x_obs.shape[0]

    # Row tile: big tiles amortize the ~0.35us per-grid-step overhead; moderate
    # batches are split into >=2 tiles so v7x's second TensorCore gets work
    # (128-row-aligned so the (1, tm) output blocks stay lane-dense/unmasked);
    # small batches get one 8-row-aligned tile.
    if B >= 2 * tile_m:
        tm = tile_m
    elif B > 256:
        tm = _round_up(pl.cdiv(B, 2), 128)
    else:
        tm = _round_up(max(B, 1), 8)
    grid_m = pl.cdiv(B, tm)
    # NOTE: tail tiles (grid_m*tm > B) compute on unspecified padding rows; the
    # results are discarded by the [:B] slice below, so output is correct.

    g_obs, b_obs = prep["g_obs"], prep["b_obs"]
    g_act, b_act = prep["g_act"], prep["b_act"]
    w1_obs, w1_act, b1 = prep["w1_obs"], prep["w1_act"], prep["b1"]
    w2, b2, w3, b3 = prep["w2"], prep["b2"], prep["w3"], prep["b3"]
    w4, b4 = prep["w4"], prep["b4"]

    kernel = functools.partial(_reward_kernel, inv_d=1.0 / float(D))

    def make_call(single_buffer_weights):
        def const_spec(arr):
            # grid-invariant block: maps to (0,0) on every step.
            if single_buffer_weights:
                return pl.BlockSpec(arr.shape, lambda i: (0, 0),
                                    pipeline_mode=pl.Buffered(1))
            return pl.BlockSpec(arr.shape, lambda i: (0, 0))

        grid_spec = pltpu.PrefetchScalarGridSpec(
            num_scalar_prefetch=0,
            grid=(grid_m,),
            in_specs=[
                pl.BlockSpec((tm, Do), lambda i: (i, 0)),     # obs rows
                pl.BlockSpec((tm, Da), lambda i: (i, 0)),     # act rows
                const_spec(g_obs), const_spec(b_obs),
                const_spec(g_act), const_spec(b_act),
                const_spec(w1_obs), const_spec(w1_act), const_spec(b1),
                const_spec(w2), const_spec(b2),
                const_spec(w3), const_spec(b3),
                const_spec(w4), const_spec(b4),
            ],
            # lane-dense output: one (1, tm) row chunk per grid step
            out_specs=pl.BlockSpec((1, tm), lambda i: (0, i)),
        )
        return pl.pallas_call(
            kernel,
            out_shape=jax.ShapeDtypeStruct((1, grid_m * tm), jnp.float32),
            grid_spec=grid_spec,
            compiler_params=pltpu.CompilerParams(
                dimension_semantics=("parallel",),
                vmem_limit_bytes=vmem_limit_bytes),
        )

    args = (x_obs, x_act, g_obs, b_obs, g_act, b_act,
            w1_obs, w1_act, b1, w2, b2, w3, b3, w4, b4)
    try:
        out = make_call(True)(*args)
    except Exception:
        # jax version without BlockSpec pipeline_mode / Buffered(1): fall back
        # to default double-buffered weight blocks (extra VMEM, same results).
        out = make_call(False)(*args)

    # drop tail padding rows (if any) and restore (..., 1)
    return out.reshape(-1)[:B].reshape(*lead, 1)


def init_params(key, in_dim, n_agents, hidden_size):
    """Deterministic init mimicking nn.Linear default (uniform +-1/sqrt(fan_in))."""
    D = in_dim * n_agents
    H = hidden_size
    ks = jax.random.split(key, 4)

    def lin(k, fan_in, fan_out):
        kw, kb = jax.random.split(k)
        bound = 1.0 / jnp.sqrt(fan_in)
        w = jax.random.uniform(kw, (fan_in, fan_out), jnp.float32, -bound, bound)
        bb = jax.random.uniform(kb, (fan_out,), jnp.float32, -bound, bound)
        return w, bb

    w1, b1 = lin(ks[0], D, H)
    w2, b2 = lin(ks[1], H, H)
    w3, b3 = lin(ks[2], H, H)
    w4, b4 = lin(ks[3], H, 1)
    return {
        "ln_gamma": jnp.ones((D,), jnp.float32),
        "ln_beta": jnp.zeros((D,), jnp.float32),
        "w1": w1, "b1": b1,
        "w2": w2, "b2": b2,
        "w3": w3, "b3": b3,
        "w4": w4, "b4": b4,
    }


def _reference(obss, actions, p):
    cat = jnp.concatenate([obss, actions], axis=-1)
    x = cat.reshape(*cat.shape[:-2], -1)
    mu = jnp.mean(x, -1, keepdims=True)
    var = jnp.mean((x - mu) ** 2, -1, keepdims=True)
    h = (x - mu) / jnp.sqrt(var + 1e-5) * p["ln_gamma"] + p["ln_beta"]
    h = jnp.maximum(h @ p["w1"] + p["b1"], 0.0)
    h = jnp.maximum(h @ p["w2"] + p["b2"], 0.0)
    h = jnp.maximum(h @ p["w3"] + p["b3"], 0.0)
    return h @ p["w4"] + p["b4"]


if __name__ == "__main__":
    # Small shapes: seq=2, batch=4 (flatten to 8 rows), n_agents=2,
    # obs_dim=24, act_dim=8 -> per-agent in_dim=32, D=64, hidden=32.
    seq, batch, n_agents = 2, 4, 2
    obs_dim, act_dim, hidden = 24, 8, 32
    in_dim = obs_dim + act_dim

    key = jax.random.PRNGKey(0)
    k_obs, k_act, k_par = jax.random.split(key, 3)
    obss = jax.random.normal(k_obs, (seq, batch, n_agents, obs_dim), jnp.float32)
    actions = jax.random.normal(k_act, (seq, batch, n_agents, act_dim), jnp.float32)

    params = init_params(k_par, in_dim, n_agents, hidden)
    # One-time param prep (permute/pad/bf16-cast), hoisted out of the forward.
    prep = prepare_reward_params(params, n_agents, obs_dim, act_dim)

    out = reward_estimator_forward(obss, actions, prep)
    out = jax.block_until_ready(out)

    ref = _reference(obss, actions, params)
    assert out.shape == (seq, batch, 1), out.shape
    # bf16 matmuls vs. f32 reference -> loosened tolerance.
    assert jnp.allclose(out, ref, atol=3e-2, rtol=3e-2), \
        float(jnp.max(jnp.abs(out - ref)))

    print("KERNEL_OK")
</pallas_src>

<mosaic_0001>
module attributes {stable_mosaic.version = 11 : i64} {
  func.func @_reward_kernel(%arg0: i32, %arg1: memref<8x48xf32, #tpu.memory_space<vmem>>, %arg2: memref<8x16xf32, #tpu.memory_space<vmem>>, %arg3: memref<1x48xf32, #tpu.memory_space<vmem>>, %arg4: memref<1x48xf32, #tpu.memory_space<vmem>>, %arg5: memref<1x16xf32, #tpu.memory_space<vmem>>, %arg6: memref<1x16xf32, #tpu.memory_space<vmem>>, %arg7: memref<48x128xbf16, #tpu.memory_space<vmem>>, %arg8: memref<16x128xbf16, #tpu.memory_space<vmem>>, %arg9: memref<1x128xf32, #tpu.memory_space<vmem>>, %arg10: memref<128x128xbf16, #tpu.memory_space<vmem>>, %arg11: memref<1x128xf32, #tpu.memory_space<vmem>>, %arg12: memref<128x128xbf16, #tpu.memory_space<vmem>>, %arg13: memref<1x128xf32, #tpu.memory_space<vmem>>, %arg14: memref<1x128xbf16, #tpu.memory_space<vmem>>, %arg15: memref<1x1xf32, #tpu.memory_space<vmem>>, %arg16: memref<1x8xf32, #tpu.memory_space<vmem>>) attributes {dimension_semantics = [#tpu.dimension_semantics<parallel>], iteration_bounds = array<i64: 1>, scalar_prefetch = 0 : i64, scratch_operands = 0 : i64, tpu.core_type = #tpu.core_type<tc>, window_params = [{transform_indices = @transform_0, window_bounds = array<i64: 8, 48>}, {transform_indices = @transform_1, window_bounds = array<i64: 8, 16>}, {pipeline_mode = #tpu.pipeline_mode<synchronous>, transform_indices = @transform_2, window_bounds = array<i64: 1, 48>}, {pipeline_mode = #tpu.pipeline_mode<synchronous>, transform_indices = @transform_3, window_bounds = array<i64: 1, 48>}, {pipeline_mode = #tpu.pipeline_mode<synchronous>, transform_indices = @transform_4, window_bounds = array<i64: 1, 16>}, {pipeline_mode = #tpu.pipeline_mode<synchronous>, transform_indices = @transform_5, window_bounds = array<i64: 1, 16>}, {pipeline_mode = #tpu.pipeline_mode<synchronous>, transform_indices = @transform_6, window_bounds = array<i64: 48, 128>}, {pipeline_mode = #tpu.pipeline_mode<synchronous>, transform_indices = @transform_7, window_bounds = array<i64: 16, 128>}, {pipeline_mode = #tpu.pipeline_mode<synchronous>, transform_indices = @transform_8, window_bounds = array<i64: 1, 128>}, {pipeline_mode = #tpu.pipeline_mode<synchronous>, transform_indices = @transform_9, window_bounds = array<i64: 128, 128>}, {pipeline_mode = #tpu.pipeline_mode<synchronous>, transform_indices = @transform_10, window_bounds = array<i64: 1, 128>}, {pipeline_mode = #tpu.pipeline_mode<synchronous>, transform_indices = @transform_11, window_bounds = array<i64: 128, 128>}, {pipeline_mode = #tpu.pipeline_mode<synchronous>, transform_indices = @transform_12, window_bounds = array<i64: 1, 128>}, {pipeline_mode = #tpu.pipeline_mode<synchronous>, transform_indices = @transform_13, window_bounds = array<i64: 1, 128>}, {pipeline_mode = #tpu.pipeline_mode<synchronous>, transform_indices = @transform_14, window_bounds = array<i64: 1, 1>}, {transform_indices = @transform_15, window_bounds = array<i64: 1, 8>}]} {
    %c0 = arith.constant 0 : index
    %c0_0 = arith.constant 0 : index
    %0 = vector.load %arg1[%c0, %c0_0] : memref<8x48xf32, #tpu.memory_space<vmem>>, vector<8x48xf32>
    %c0_1 = arith.constant 0 : index
    %c0_2 = arith.constant 0 : index
    %1 = vector.load %arg2[%c0_1, %c0_2] : memref<8x16xf32, #tpu.memory_space<vmem>>, vector<8x16xf32>
    %cst = arith.constant dense<0.000000e+00> : vector<8xf32>
    %2 = vector.multi_reduction <add>, %0, %cst [1] : vector<8x48xf32> to vector<8xf32>
    %3 = vector.shape_cast %2 : vector<8xf32> to vector<8x1xf32>
    %cst_3 = arith.constant dense<0.000000e+00> : vector<8xf32>
    %4 = vector.multi_reduction <add>, %1, %cst_3 [1] : vector<8x16xf32> to vector<8xf32>
    %5 = vector.shape_cast %4 : vector<8xf32> to vector<8x1xf32>
    %6 = arith.addf %3, %5 : vector<8x1xf32>
    %7 = arith.mulf %0, %0 : vector<8x48xf32>
    %cst_4 = arith.constant dense<0.000000e+00> : vector<8xf32>
    %8 = vector.multi_reduction <add>, %7, %cst_4 [1] : vector<8x48xf32> to vector<8xf32>
    %9 = vector.shape_cast %8 : vector<8xf32> to vector<8x1xf32>
    %10 = arith.mulf %1, %1 : vector<8x16xf32>
    %cst_5 = arith.constant dense<0.000000e+00> : vector<8xf32>
    %11 = vector.multi_reduction <add>, %10, %cst_5 [1] : vector<8x16xf32> to vector<8xf32>
    %12 = vector.shape_cast %11 : vector<8xf32> to vector<8x1xf32>
    %13 = arith.addf %9, %12 : vector<8x1xf32>
    %cst_6 = arith.constant 1.562500e-02 : f32
    %14 = vector.broadcast %cst_6 : f32 to vector<8x1xf32>
    %15 = arith.mulf %6, %14 : vector<8x1xf32>
    %cst_7 = arith.constant 1.562500e-02 : f32
    %16 = vector.broadcast %cst_7 : f32 to vector<8x1xf32>
    %17 = arith.mulf %13, %16 : vector<8x1xf32>
    %18 = arith.mulf %15, %15 : vector<8x1xf32>
    %19 = arith.subf %17, %18 : vector<8x1xf32>
    %cst_8 = arith.constant 0.000000e+00 : f32
    %20 = vector.broadcast %cst_8 : f32 to vector<8x1xf32>
    %21 = arith.maximumf %19, %20 : vector<8x1xf32>
    %cst_9 = arith.constant 9.99999974E-6 : f32
    %22 = vector.broadcast %cst_9 : f32 to vector<8x1xf32>
    %23 = arith.addf %21, %22 : vector<8x1xf32>
    %24 = math.rsqrt %23 : vector<8x1xf32>
    %25 = vector.broadcast %15 : vector<8x1xf32> to vector<8x48xf32>
    %26 = arith.subf %0, %25 : vector<8x48xf32>
    %27 = vector.broadcast %24 : vector<8x1xf32> to vector<8x48xf32>
    %28 = arith.mulf %26, %27 : vector<8x48xf32>
    %c0_10 = arith.constant 0 : index
    %c0_11 = arith.constant 0 : index
    %29 = vector.load %arg3[%c0_10, %c0_11] : memref<1x48xf32, #tpu.memory_space<vmem>>, vector<1x48xf32>
    %30 = vector.broadcast %29 : vector<1x48xf32> to vector<8x48xf32>
    %31 = arith.mulf %28, %30 : vector<8x48xf32>
    %c0_12 = arith.constant 0 : index
    %c0_13 = arith.constant 0 : index
    %32 = vector.load %arg4[%c0_12, %c0_13] : memref<1x48xf32, #tpu.memory_space<vmem>>, vector<1x48xf32>
    %33 = vector.broadcast %32 : vector<1x48xf32> to vector<8x48xf32>
    %34 = arith.addf %31, %33 : vector<8x48xf32>
    %35 = vector.broadcast %15 : vector<8x1xf32> to vector<8x16xf32>
    %36 = arith.subf %1, %35 : vector<8x16xf32>
    %37 = vector.broadcast %24 : vector<8x1xf32> to vector<8x16xf32>
    %38 = arith.mulf %36, %37 : vector<8x16xf32>
    %c0_14 = arith.constant 0 : index
    %c0_15 = arith.constant 0 : index
    %39 = vector.load %arg5[%c0_14, %c0_15] : memref<1x16xf32, #tpu.memory_space<vmem>>, vector<1x16xf32>
    %40 = vector.broadcast %39 : vector<1x16xf32> to vector<8x16xf32>
    %41 = arith.mulf %38, %40 : vector<8x16xf32>
    %c0_16 = arith.constant 0 : index
    %c0_17 = arith.constant 0 : index
    %42 = vector.load %arg6[%c0_16, %c0_17] : memref<1x16xf32, #tpu.memory_space<vmem>>, vector<1x16xf32>
    %43 = vector.broadcast %42 : vector<1x16xf32> to vector<8x16xf32>
    %44 = arith.addf %41, %43 : vector<8x16xf32>
    %45 = arith.truncf %34 : vector<8x48xf32> to vector<8x48xbf16>
    %c0_18 = arith.constant 0 : index
    %c0_19 = arith.constant 0 : index
    %46 = vector.load %arg7[%c0_18, %c0_19] : memref<48x128xbf16, #tpu.memory_space<vmem>>, vector<48x128xbf16>
    %cst_20 = arith.constant dense<0.000000e+00> : vector<8x128xf32>
    %47 = tpu.matmul %45, %46, %cst_20 {dimension_numbers = #tpu.dot_dimension_numbers<[1], [0], [0], [1], [0, 0, 1, 1], [], []>} : vector<8x48xbf16>, vector<48x128xbf16>, vector<8x128xf32> -> vector<8x128xf32>
    %48 = arith.truncf %44 : vector<8x16xf32> to vector<8x16xbf16>
    %c0_21 = arith.constant 0 : index
    %c0_22 = arith.constant 0 : index
    %49 = vector.load %arg8[%c0_21, %c0_22] : memref<16x128xbf16, #tpu.memory_space<vmem>>, vector<16x128xbf16>
    %cst_23 = arith.constant dense<0.000000e+00> : vector<8x128xf32>
    %50 = tpu.matmul %48, %49, %cst_23 {dimension_numbers = #tpu.dot_dimension_numbers<[1], [0], [0], [1], [0, 0, 1, 1], [], []>} : vector<8x16xbf16>, vector<16x128xbf16>, vector<8x128xf32> -> vector<8x128xf32>
    %51 = arith.addf %47, %50 : vector<8x128xf32>
    %c0_24 = arith.constant 0 : index
    %c0_25 = arith.constant 0 : index
    %52 = vector.load %arg9[%c0_24, %c0_25] : memref<1x128xf32, #tpu.memory_space<vmem>>, vector<1x128xf32>
    %53 = vector.broadcast %52 : vector<1x128xf32> to vector<8x128xf32>
    %54 = arith.addf %51, %53 : vector<8x128xf32>
    %cst_26 = arith.constant 0.000000e+00 : f32
    %55 = vector.broadcast %cst_26 : f32 to vector<8x128xf32>
    %56 = arith.maximumf %54, %55 : vector<8x128xf32>
    %57 = arith.truncf %56 : vector<8x128xf32> to vector<8x128xbf16>
    %c0_27 = arith.constant 0 : index
    %c0_28 = arith.constant 0 : index
    %58 = vector.load %arg10[%c0_27, %c0_28] : memref<128x128xbf16, #tpu.memory_space<vmem>>, vector<128x128xbf16>
    %cst_29 = arith.constant dense<0.000000e+00> : vector<8x128xf32>
    %59 = tpu.matmul %57, %58, %cst_29 {dimension_numbers = #tpu.dot_dimension_numbers<[1], [0], [0], [1], [0, 0, 1, 1], [], []>} : vector<8x128xbf16>, vector<128x128xbf16>, vector<8x128xf32> -> vector<8x128xf32>
    %c0_30 = arith.constant 0 : index
    %c0_31 = arith.constant 0 : index
    %60 = vector.load %arg11[%c0_30, %c0_31] : memref<1x128xf32, #tpu.memory_space<vmem>>, vector<1x128xf32>
    %61 = vector.broadcast %60 : vector<1x128xf32> to vector<8x128xf32>
    %62 = arith.addf %59, %61 : vector<8x128xf32>
    %cst_32 = arith.constant 0.000000e+00 : f32
    %63 = vector.broadcast %cst_32 : f32 to vector<8x128xf32>
    %64 = arith.maximumf %62, %63 : vector<8x128xf32>
    %65 = arith.truncf %64 : vector<8x128xf32> to vector<8x128xbf16>
    %c0_33 = arith.constant 0 : index
    %c0_34 = arith.constant 0 : index
    %66 = vector.load %arg12[%c0_33, %c0_34] : memref<128x128xbf16, #tpu.memory_space<vmem>>, vector<128x128xbf16>
    %cst_35 = arith.constant dense<0.000000e+00> : vector<8x128xf32>
    %67 = tpu.matmul %65, %66, %cst_35 {dimension_numbers = #tpu.dot_dimension_numbers<[1], [0], [0], [1], [0, 0, 1, 1], [], []>} : vector<8x128xbf16>, vector<128x128xbf16>, vector<8x128xf32> -> vector<8x128xf32>
    %c0_36 = arith.constant 0 : index
    %c0_37 = arith.constant 0 : index
    %68 = vector.load %arg13[%c0_36, %c0_37] : memref<1x128xf32, #tpu.memory_space<vmem>>, vector<1x128xf32>
    %69 = vector.broadcast %68 : vector<1x128xf32> to vector<8x128xf32>
    %70 = arith.addf %67, %69 : vector<8x128xf32>
    %cst_38 = arith.constant 0.000000e+00 : f32
    %71 = vector.broadcast %cst_38 : f32 to vector<8x128xf32>
    %72 = arith.maximumf %70, %71 : vector<8x128xf32>
    %c0_39 = arith.constant 0 : index
    %c0_40 = arith.constant 0 : index
    %73 = vector.load %arg14[%c0_39, %c0_40] : memref<1x128xbf16, #tpu.memory_space<vmem>>, vector<1x128xbf16>
    %74 = arith.truncf %72 : vector<8x128xf32> to vector<8x128xbf16>
    %cst_41 = arith.constant dense<0.000000e+00> : vector<1x8xf32>
    %75 = tpu.matmul %73, %74, %cst_41 {dimension_numbers = #tpu.dot_dimension_numbers<[1], [1], [0], [0], [0, 0, 1, 0], [], []>} : vector<1x128xbf16>, vector<8x128xbf16>, vector<1x8xf32> -> vector<1x8xf32>
    %c0_42 = arith.constant 0 : index
    %c0_43 = arith.constant 0 : index
    %76 = vector.load %arg15[%c0_42, %c0_43] : memref<1x1xf32, #tpu.memory_space<vmem>>, vector<1x1xf32>
    %77 = vector.broadcast %76 : vector<1x1xf32> to vector<1x8xf32>
    %78 = arith.addf %75, %77 : vector<1x8xf32>
    %c0_44 = arith.constant 0 : index
    %c0_45 = arith.constant 0 : index
    %79 = vector.load %arg16[%c0_44, %c0_45] : memref<1x8xf32, #tpu.memory_space<vmem>>, vector<1x8xf32>
    tpu.vector_store %arg16[%c0_44, %c0_45], %78 {strides = array<i32>} : memref<1x8xf32, #tpu.memory_space<vmem>>, vector<1x8xf32>,
    return
  }
  func.func @transform_0(%arg0: i32) -> (i32, i32) {
    %c0_i32 = arith.constant 0 : i32
    %c0_i32_0 = arith.constant 0 : i32
    return %arg0, %c0_i32 : i32, i32
  }
  func.func @transform_1(%arg0: i32) -> (i32, i32) {
    %c0_i32 = arith.constant 0 : i32
    %c0_i32_0 = arith.constant 0 : i32
    return %arg0, %c0_i32 : i32, i32
  }
  func.func @transform_2(%arg0: i32) -> (i32, i32) {
    %c0_i32 = arith.constant 0 : i32
    %c0_i32_0 = arith.constant 0 : i32
    %c0_i32_1 = arith.constant 0 : i32
    return %c0_i32, %c0_i32_0 : i32, i32
  }
  func.func @transform_3(%arg0: i32) -> (i32, i32) {
    %c0_i32 = arith.constant 0 : i32
    %c0_i32_0 = arith.constant 0 : i32
    %c0_i32_1 = arith.constant 0 : i32
    return %c0_i32, %c0_i32_0 : i32, i32
  }
  func.func @transform_4(%arg0: i32) -> (i32, i32) {
    %c0_i32 = arith.constant 0 : i32
    %c0_i32_0 = arith.constant 0 : i32
    %c0_i32_1 = arith.constant 0 : i32
    return %c0_i32, %c0_i32_0 : i32, i32
  }
  func.func @transform_5(%arg0: i32) -> (i32, i32) {
    %c0_i32 = arith.constant 0 : i32
    %c0_i32_0 = arith.constant 0 : i32
    %c0_i32_1 = arith.constant 0 : i32
    return %c0_i32, %c0_i32_0 : i32, i32
  }
  func.func @transform_6(%arg0: i32) -> (i32, i32) {
    %c0_i32 = arith.constant 0 : i32
    %c0_i32_0 = arith.constant 0 : i32
    %c0_i32_1 = arith.constant 0 : i32
    return %c0_i32, %c0_i32_0 : i32, i32
  }
  func.func @transform_7(%arg0: i32) -> (i32, i32) {
    %c0_i32 = arith.constant 0 : i32
    %c0_i32_0 = arith.constant 0 : i32
    %c0_i32_1 = arith.constant 0 : i32
    return %c0_i32, %c0_i32_0 : i32, i32
  }
  func.func @transform_8(%arg0: i32) -> (i32, i32) {
    %c0_i32 = arith.constant 0 : i32
    %c0_i32_0 = arith.constant 0 : i32
    %c0_i32_1 = arith.constant 0 : i32
    return %c0_i32, %c0_i32_0 : i32, i32
  }
  func.func @transform_9(%arg0: i32) -> (i32, i32) {
    %c0_i32 = arith.constant 0 : i32
    %c0_i32_0 = arith.constant 0 : i32
    %c0_i32_1 = arith.constant 0 : i32
    return %c0_i32, %c0_i32_0 : i32, i32
  }
  func.func @transform_10(%arg0: i32) -> (i32, i32) {
    %c0_i32 = arith.constant 0 : i32
    %c0_i32_0 = arith.constant 0 : i32
    %c0_i32_1 = arith.constant 0 : i32
    return %c0_i32, %c0_i32_0 : i32, i32
  }
  func.func @transform_11(%arg0: i32) -> (i32, i32) {
    %c0_i32 = arith.constant 0 : i32
    %c0_i32_0 = arith.constant 0 : i32
    %c0_i32_1 = arith.constant 0 : i32
    return %c0_i32, %c0_i32_0 : i32, i32
  }
  func.func @transform_12(%arg0: i32) -> (i32, i32) {
    %c0_i32 = arith.constant 0 : i32
    %c0_i32_0 = arith.constant 0 : i32
    %c0_i32_1 = arith.constant 0 : i32
    return %c0_i32, %c0_i32_0 : i32, i32
  }
  func.func @transform_13(%arg0: i32) -> (i32, i32) {
    %c0_i32 = arith.constant 0 : i32
    %c0_i32_0 = arith.constant 0 : i32
    %c0_i32_1 = arith.constant 0 : i32
    return %c0_i32, %c0_i32_0 : i32, i32
  }
  func.func @transform_14(%arg0: i32) -> (i32, i32) {
    %c0_i32 = arith.constant 0 : i32
    %c0_i32_0 = arith.constant 0 : i32
    %c0_i32_1 = arith.constant 0 : i32
    return %c0_i32, %c0_i32_0 : i32, i32
  }
  func.func @transform_15(%arg0: i32) -> (i32, i32) {
    %c0_i32 = arith.constant 0 : i32
    %c0_i32_0 = arith.constant 0 : i32
    return %c0_i32, %arg0 : i32, i32
  }
}

module attributes {stable_mosaic.version = 11 : i64} {
  func.func @_reward_kernel(%arg0: i32, %arg1: memref<8x48xf32, #tpu.memory_space<vmem>>, %arg2: memref<8x16xf32, #tpu.memory_space<vmem>>, %arg3: memref<1x48xf32, #tpu.memory_space<vmem>>, %arg4: memref<1x48xf32, #tpu.memory_space<vmem>>, %arg5: memref<1x16xf32, #tpu.memory_space<vmem>>, %arg6: memref<1x16xf32, #tpu.memory_space<vmem>>, %arg7: memref<48x128xbf16, #tpu.memory_space<vmem>>, %arg8: memref<16x128xbf16, #tpu.memory_space<vmem>>, %arg9: memref<1x128xf32, #tpu.memory_space<vmem>>, %arg10: memref<128x128xbf16, #tpu.memory_space<vmem>>, %arg11: memref<1x128xf32, #tpu.memory_space<vmem>>, %arg12: memref<128x128xbf16, #tpu.memory_space<vmem>>, %arg13: memref<1x128xf32, #tpu.memory_space<vmem>>, %arg14: memref<1x128xbf16, #tpu.memory_space<vmem>>, %arg15: memref<1x1xf32, #tpu.memory_space<vmem>>, %arg16: memref<1x8xf32, #tpu.memory_space<vmem>>) attributes {dimension_semantics = [#tpu.dimension_semantics<parallel>], iteration_bounds = array<i64: 1>, scalar_prefetch = 0 : i64, scratch_operands = 0 : i64, tpu.core_type = #tpu.core_type<tc>, window_params = [{transform_indices = @transform_0, window_bounds = array<i64: 8, 48>}, {transform_indices = @transform_1, window_bounds = array<i64: 8, 16>}, {pipeline_mode = #tpu.pipeline_mode<synchronous>, transform_indices = @transform_2, window_bounds = array<i64: 1, 48>}, {pipeline_mode = #tpu.pipeline_mode<synchronous>, transform_indices = @transform_3, window_bounds = array<i64: 1, 48>}, {pipeline_mode = #tpu.pipeline_mode<synchronous>, transform_indices = @transform_4, window_bounds = array<i64: 1, 16>}, {pipeline_mode = #tpu.pipeline_mode<synchronous>, transform_indices = @transform_5, window_bounds = array<i64: 1, 16>}, {pipeline_mode = #tpu.pipeline_mode<synchronous>, transform_indices = @transform_6, window_bounds = array<i64: 48, 128>}, {pipeline_mode = #tpu.pipeline_mode<synchronous>, transform_indices = @transform_7, window_bounds = array<i64: 16, 128>}, {pipeline_mode = #tpu.pipeline_mode<synchronous>, transform_indices = @transform_8, window_bounds = array<i64: 1, 128>}, {pipeline_mode = #tpu.pipeline_mode<synchronous>, transform_indices = @transform_9, window_bounds = array<i64: 128, 128>}, {pipeline_mode = #tpu.pipeline_mode<synchronous>, transform_indices = @transform_10, window_bounds = array<i64: 1, 128>}, {pipeline_mode = #tpu.pipeline_mode<synchronous>, transform_indices = @transform_11, window_bounds = array<i64: 128, 128>}, {pipeline_mode = #tpu.pipeline_mode<synchronous>, transform_indices = @transform_12, window_bounds = array<i64: 1, 128>}, {pipeline_mode = #tpu.pipeline_mode<synchronous>, transform_indices = @transform_13, window_bounds = array<i64: 1, 128>}, {pipeline_mode = #tpu.pipeline_mode<synchronous>, transform_indices = @transform_14, window_bounds = array<i64: 1, 1>}, {transform_indices = @transform_15, window_bounds = array<i64: 1, 8>}]} {
    %c0 = arith.constant 0 : index
    %c0_0 = arith.constant 0 : index
    %0 = vector.load %arg1[%c0, %c0_0] : memref<8x48xf32, #tpu.memory_space<vmem>>, vector<8x48xf32>
    %c0_1 = arith.constant 0 : index
    %c0_2 = arith.constant 0 : index
    %1 = vector.load %arg2[%c0_1, %c0_2] : memref<8x16xf32, #tpu.memory_space<vmem>>, vector<8x16xf32>
    %cst = arith.constant dense<0.000000e+00> : vector<8xf32>
    %2 = vector.multi_reduction <add>, %0, %cst [1] : vector<8x48xf32> to vector<8xf32>
    %3 = vector.shape_cast %2 : vector<8xf32> to vector<8x1xf32>
    %cst_3 = arith.constant dense<0.000000e+00> : vector<8xf32>
    %4 = vector.multi_reduction <add>, %1, %cst_3 [1] : vector<8x16xf32> to vector<8xf32>
    %5 = vector.shape_cast %4 : vector<8xf32> to vector<8x1xf32>
    %6 = arith.addf %3, %5 : vector<8x1xf32>
    %7 = arith.mulf %0, %0 : vector<8x48xf32>
    %cst_4 = arith.constant dense<0.000000e+00> : vector<8xf32>
    %8 = vector.multi_reduction <add>, %7, %cst_4 [1] : vector<8x48xf32> to vector<8xf32>
    %9 = vector.shape_cast %8 : vector<8xf32> to vector<8x1xf32>
    %10 = arith.mulf %1, %1 : vector<8x16xf32>
    %cst_5 = arith.constant dense<0.000000e+00> : vector<8xf32>
    %11 = vector.multi_reduction <add>, %10, %cst_5 [1] : vector<8x16xf32> to vector<8xf32>
    %12 = vector.shape_cast %11 : vector<8xf32> to vector<8x1xf32>
    %13 = arith.addf %9, %12 : vector<8x1xf32>
    %cst_6 = arith.constant 1.562500e-02 : f32
    %14 = vector.broadcast %cst_6 : f32 to vector<8x1xf32>
    %15 = arith.mulf %6, %14 : vector<8x1xf32>
    %cst_7 = arith.constant 1.562500e-02 : f32
    %16 = vector.broadcast %cst_7 : f32 to vector<8x1xf32>
    %17 = arith.mulf %13, %16 : vector<8x1xf32>
    %18 = arith.mulf %15, %15 : vector<8x1xf32>
    %19 = arith.subf %17, %18 : vector<8x1xf32>
    %cst_8 = arith.constant 0.000000e+00 : f32
    %20 = vector.broadcast %cst_8 : f32 to vector<8x1xf32>
    %21 = arith.maximumf %19, %20 : vector<8x1xf32>
    %cst_9 = arith.constant 9.99999974E-6 : f32
    %22 = vector.broadcast %cst_9 : f32 to vector<8x1xf32>
    %23 = arith.addf %21, %22 : vector<8x1xf32>
    %24 = math.rsqrt %23 : vector<8x1xf32>
    %25 = vector.broadcast %15 : vector<8x1xf32> to vector<8x48xf32>
    %26 = arith.subf %0, %25 : vector<8x48xf32>
    %27 = vector.broadcast %24 : vector<8x1xf32> to vector<8x48xf32>
    %28 = arith.mulf %26, %27 : vector<8x48xf32>
    %c0_10 = arith.constant 0 : index
    %c0_11 = arith.constant 0 : index
    %29 = vector.load %arg3[%c0_10, %c0_11] : memref<1x48xf32, #tpu.memory_space<vmem>>, vector<1x48xf32>
    %30 = vector.broadcast %29 : vector<1x48xf32> to vector<8x48xf32>
    %31 = arith.mulf %28, %30 : vector<8x48xf32>
    %c0_12 = arith.constant 0 : index
    %c0_13 = arith.constant 0 : index
    %32 = vector.load %arg4[%c0_12, %c0_13] : memref<1x48xf32, #tpu.memory_space<vmem>>, vector<1x48xf32>
    %33 = vector.broadcast %32 : vector<1x48xf32> to vector<8x48xf32>
    %34 = arith.addf %31, %33 : vector<8x48xf32>
    %35 = vector.broadcast %15 : vector<8x1xf32> to vector<8x16xf32>
    %36 = arith.subf %1, %35 : vector<8x16xf32>
    %37 = vector.broadcast %24 : vector<8x1xf32> to vector<8x16xf32>
    %38 = arith.mulf %36, %37 : vector<8x16xf32>
    %c0_14 = arith.constant 0 : index
    %c0_15 = arith.constant 0 : index
    %39 = vector.load %arg5[%c0_14, %c0_15] : memref<1x16xf32, #tpu.memory_space<vmem>>, vector<1x16xf32>
    %40 = vector.broadcast %39 : vector<1x16xf32> to vector<8x16xf32>
    %41 = arith.mulf %38, %40 : vector<8x16xf32>
    %c0_16 = arith.constant 0 : index
    %c0_17 = arith.constant 0 : index
    %42 = vector.load %arg6[%c0_16, %c0_17] : memref<1x16xf32, #tpu.memory_space<vmem>>, vector<1x16xf32>
    %43 = vector.broadcast %42 : vector<1x16xf32> to vector<8x16xf32>
    %44 = arith.addf %41, %43 : vector<8x16xf32>
    %45 = arith.truncf %34 : vector<8x48xf32> to vector<8x48xbf16>
    %c0_18 = arith.constant 0 : index
    %c0_19 = arith.constant 0 : index
    %46 = vector.load %arg7[%c0_18, %c0_19] : memref<48x128xbf16, #tpu.memory_space<vmem>>, vector<48x128xbf16>
    %cst_20 = arith.constant dense<0.000000e+00> : vector<8x128xf32>
    %47 = tpu.matmul %45, %46, %cst_20 {dimension_numbers = #tpu.dot_dimension_numbers<[1], [0], [0], [1], [0, 0, 1, 1], [], []>} : vector<8x48xbf16>, vector<48x128xbf16>, vector<8x128xf32> -> vector<8x128xf32>
    %48 = arith.truncf %44 : vector<8x16xf32> to vector<8x16xbf16>
    %c0_21 = arith.constant 0 : index
    %c0_22 = arith.constant 0 : index
    %49 = vector.load %arg8[%c0_21, %c0_22] : memref<16x128xbf16, #tpu.memory_space<vmem>>, vector<16x128xbf16>
    %cst_23 = arith.constant dense<0.000000e+00> : vector<8x128xf32>
    %50 = tpu.matmul %48, %49, %cst_23 {dimension_numbers = #tpu.dot_dimension_numbers<[1], [0], [0], [1], [0, 0, 1, 1], [], []>} : vector<8x16xbf16>, vector<16x128xbf16>, vector<8x128xf32> -> vector<8x128xf32>
    %51 = arith.addf %47, %50 : vector<8x128xf32>
    %c0_24 = arith.constant 0 : index
    %c0_25 = arith.constant 0 : index
    %52 = vector.load %arg9[%c0_24, %c0_25] : memref<1x128xf32, #tpu.memory_space<vmem>>, vector<1x128xf32>
    %53 = vector.broadcast %52 : vector<1x128xf32> to vector<8x128xf32>
    %54 = arith.addf %51, %53 : vector<8x128xf32>
    %cst_26 = arith.constant 0.000000e+00 : f32
    %55 = vector.broadcast %cst_26 : f32 to vector<8x128xf32>
    %56 = arith.maximumf %54, %55 : vector<8x128xf32>
    %57 = arith.truncf %56 : vector<8x128xf32> to vector<8x128xbf16>
    %c0_27 = arith.constant 0 : index
    %c0_28 = arith.constant 0 : index
    %58 = vector.load %arg10[%c0_27, %c0_28] : memref<128x128xbf16, #tpu.memory_space<vmem>>, vector<128x128xbf16>
    %cst_29 = arith.constant dense<0.000000e+00> : vector<8x128xf32>
    %59 = tpu.matmul %57, %58, %cst_29 {dimension_numbers = #tpu.dot_dimension_numbers<[1], [0], [0], [1], [0, 0, 1, 1], [], []>} : vector<8x128xbf16>, vector<128x128xbf16>, vector<8x128xf32> -> vector<8x128xf32>
    %c0_30 = arith.constant 0 : index
    %c0_31 = arith.constant 0 : index
    %60 = vector.load %arg11[%c0_30, %c0_31] : memref<1x128xf32, #tpu.memory_space<vmem>>, vector<1x128xf32>
    %61 = vector.broadcast %60 : vector<1x128xf32> to vector<8x128xf32>
    %62 = arith.addf %59, %61 : vector<8x128xf32>
    %cst_32 = arith.constant 0.000000e+00 : f32
    %63 = vector.broadcast %cst_32 : f32 to vector<8x128xf32>
    %64 = arith.maximumf %62, %63 : vector<8x128xf32>
    %65 = arith.truncf %64 : vector<8x128xf32> to vector<8x128xbf16>
    %c0_33 = arith.constant 0 : index
    %c0_34 = arith.constant 0 : index
    %66 = vector.load %arg12[%c0_33, %c0_34] : memref<128x128xbf16, #tpu.memory_space<vmem>>, vector<128x128xbf16>
    %cst_35 = arith.constant dense<0.000000e+00> : vector<8x128xf32>
    %67 = tpu.matmul %65, %66, %cst_35 {dimension_numbers = #tpu.dot_dimension_numbers<[1], [0], [0], [1], [0, 0, 1, 1], [], []>} : vector<8x128xbf16>, vector<128x128xbf16>, vector<8x128xf32> -> vector<8x128xf32>
    %c0_36 = arith.constant 0 : index
    %c0_37 = arith.constant 0 : index
    %68 = vector.load %arg13[%c0_36, %c0_37] : memref<1x128xf32, #tpu.memory_space<vmem>>, vector<1x128xf32>
    %69 = vector.broadcast %68 : vector<1x128xf32> to vector<8x128xf32>
    %70 = arith.addf %67, %69 : vector<8x128xf32>
    %cst_38 = arith.constant 0.000000e+00 : f32
    %71 = vector.broadcast %cst_38 : f32 to vector<8x128xf32>
    %72 = arith.maximumf %70, %71 : vector<8x128xf32>
    %c0_39 = arith.constant 0 : index
    %c0_40 = arith.constant 0 : index
    %73 = vector.load %arg14[%c0_39, %c0_40] : memref<1x128xbf16, #tpu.memory_space<vmem>>, vector<1x128xbf16>
    %74 = arith.truncf %72 : vector<8x128xf32> to vector<8x128xbf16>
    %cst_41 = arith.constant dense<0.000000e+00> : vector<1x8xf32>
    %75 = tpu.matmul %73, %74, %cst_41 {dimension_numbers = #tpu.dot_dimension_numbers<[1], [1], [0], [0], [0, 0, 1, 0], [], []>} : vector<1x128xbf16>, vector<8x128xbf16>, vector<1x8xf32> -> vector<1x8xf32>
    %c0_42 = arith.constant 0 : index
    %c0_43 = arith.constant 0 : index
    %76 = vector.load %arg15[%c0_42, %c0_43] : memref<1x1xf32, #tpu.memory_space<vmem>>, vector<1x1xf32>
    %77 = vector.broadcast %76 : vector<1x1xf32> to vector<1x8xf32>
    %78 = arith.addf %75, %77 : vector<1x8xf32>
    %c0_44 = arith.constant 0 : index
    %c0_45 = arith.constant 0 : index
    %79 = vector.load %arg16[%c0_44, %c0_45] : memref<1x8xf32, #tpu.memory_space<vmem>>, vector<1x8xf32>
    tpu.vector_store %arg16[%c0_44, %c0_45], %78 {strides = array<i32>} : memref<1x8xf32, #tpu.memory_space<vmem>>, vector<1x8xf32>,
    return
  }
  func.func @transform_0(%arg0: i32) -> (i32, i32) {
    %c0_i32 = arith.constant 0 : i32
    %c0_i32_0 = arith.constant 0 : i32
    return %arg0, %c0_i32 : i32, i32
  }
  func.func @transform_1(%arg0: i32) -> (i32, i32) {
    %c0_i32 = arith.constant 0 : i32
    %c0_i32_0 = arith.constant 0 : i32
    return %arg0, %c0_i32 : i32, i32
  }
  func.func @transform_2(%arg0: i32) -> (i32, i32) {
    %c0_i32 = arith.constant 0 : i32
    %c0_i32_0 = arith.constant 0 : i32
    %c0_i32_1 = arith.constant 0 : i32
    return %c0_i32, %c0_i32_0 : i32, i32
  }
  func.func @transform_3(%arg0: i32) -> (i32, i32) {
    %c0_i32 = arith.constant 0 : i32
    %c0_i32_0 = arith.constant 0 : i32
    %c0_i32_1 = arith.constant 0 : i32
    return %c0_i32, %c0_i32_0 : i32, i32
  }
  func.func @transform_4(%arg0: i32) -> (i32, i32) {
    %c0_i32 = arith.constant 0 : i32
    %c0_i32_0 = arith.constant 0 : i32
    %c0_i32_1 = arith.constant 0 : i32
    return %c0_i32, %c0_i32_0 : i32, i32
  }
  func.func @transform_5(%arg0: i32) -> (i32, i32) {
    %c0_i32 = arith.constant 0 : i32
    %c0_i32_0 = arith.constant 0 : i32
    %c0_i32_1 = arith.constant 0 : i32
    return %c0_i32, %c0_i32_0 : i32, i32
  }
  func.func @transform_6(%arg0: i32) -> (i32, i32) {
    %c0_i32 = arith.constant 0 : i32
    %c0_i32_0 = arith.constant 0 : i32
    %c0_i32_1 = arith.constant 0 : i32
    return %c0_i32, %c0_i32_0 : i32, i32
  }
  func.func @transform_7(%arg0: i32) -> (i32, i32) {
    %c0_i32 = arith.constant 0 : i32
    %c0_i32_0 = arith.constant 0 : i32
    %c0_i32_1 = arith.constant 0 : i32
    return %c0_i32, %c0_i32_0 : i32, i32
  }
  func.func @transform_8(%arg0: i32) -> (i32, i32) {
    %c0_i32 = arith.constant 0 : i32
    %c0_i32_0 = arith.constant 0 : i32
    %c0_i32_1 = arith.constant 0 : i32
    return %c0_i32, %c0_i32_0 : i32, i32
  }
  func.func @transform_9(%arg0: i32) -> (i32, i32) {
    %c0_i32 = arith.constant 0 : i32
    %c0_i32_0 = arith.constant 0 : i32
    %c0_i32_1 = arith.constant 0 : i32
    return %c0_i32, %c0_i32_0 : i32, i32
  }
  func.func @transform_10(%arg0: i32) -> (i32, i32) {
    %c0_i32 = arith.constant 0 : i32
    %c0_i32_0 = arith.constant 0 : i32
    %c0_i32_1 = arith.constant 0 : i32
    return %c0_i32, %c0_i32_0 : i32, i32
  }
  func.func @transform_11(%arg0: i32) -> (i32, i32) {
    %c0_i32 = arith.constant 0 : i32
    %c0_i32_0 = arith.constant 0 : i32
    %c0_i32_1 = arith.constant 0 : i32
    return %c0_i32, %c0_i32_0 : i32, i32
  }
  func.func @transform_12(%arg0: i32) -> (i32, i32) {
    %c0_i32 = arith.constant 0 : i32
    %c0_i32_0 = arith.constant 0 : i32
    %c0_i32_1 = arith.constant 0 : i32
    return %c0_i32, %c0_i32_0 : i32, i32
  }
  func.func @transform_13(%arg0: i32) -> (i32, i32) {
    %c0_i32 = arith.constant 0 : i32
    %c0_i32_0 = arith.constant 0 : i32
    %c0_i32_1 = arith.constant 0 : i32
    return %c0_i32, %c0_i32_0 : i32, i32
  }
  func.func @transform_14(%arg0: i32) -> (i32, i32) {
    %c0_i32 = arith.constant 0 : i32
    %c0_i32_0 = arith.constant 0 : i32
    %c0_i32_1 = arith.constant 0 : i32
    return %c0_i32, %c0_i32_0 : i32, i32
  }
  func.func @transform_15(%arg0: i32) -> (i32, i32) {
    %c0_i32 = arith.constant 0 : i32
    %c0_i32_0 = arith.constant 0 : i32
    return %c0_i32, %arg0 : i32, i32
  }
}

</mosaic_0001>

<llo_original>
// kernel: tpu_custom_call.1
$region0: #{tpu_custom_call.1}
  #allocation0 [shape = 'u32[]', space=smem, size = 0x4, offset = 0x4, fixed_abs, tag = 'smem constant byte address 0x4 - core index']
  #allocation1 [shape = 'u32[144,128]{1,0:T(1,128)}', space=vmem, size = 0x12000, scoped, tag = 'internal scratch']
  #allocation2 [shape = 'f32[1,1]{1,0:T(1,128)S(1)}', space=vmem, size = 0x200, scoped, tag = 'scoped memory for tpu_custom_call.1']
  %s0 = inlined_call_operand.hbm [shape: f32[8,48], index: 0, kind: input, shape index: {}]
  %s1 = inlined_call_operand.hbm [shape: f32[8,16], index: 1, kind: input, shape index: {}]
  %s2 = inlined_call_operand.vmem [shape: f32[1,48], index: 2, kind: input, shape index: {}]
  %s3 = inlined_call_operand.vmem [shape: f32[1,48], index: 3, kind: input, shape index: {}]
  %s4 = inlined_call_operand.vmem [shape: f32[1,16], index: 4, kind: input, shape index: {}]
  %s5 = inlined_call_operand.vmem [shape: f32[1,16], index: 5, kind: input, shape index: {}]
  %s6 = inlined_call_operand.hbm [shape: bf16[48,128], index: 6, kind: input, shape index: {}]
  %s7 = inlined_call_operand.vmem [shape: bf16[16,128], index: 7, kind: input, shape index: {}]
  %s8 = inlined_call_operand.vmem [shape: f32[1,128], index: 8, kind: input, shape index: {}]
  %s9 = inlined_call_operand.hbm [shape: bf16[128,128], index: 9, kind: input, shape index: {}]
  %s10 = inlined_call_operand.vmem [shape: f32[1,128], index: 10, kind: input, shape index: {}]
  %s11 = inlined_call_operand.hbm [shape: bf16[128,128], index: 11, kind: input, shape index: {}]
  %s12 = inlined_call_operand.vmem [shape: f32[1,128], index: 12, kind: input, shape index: {}]
  %s13 = inlined_call_operand.vmem [shape: bf16[1,128], index: 13, kind: input, shape index: {}]
  %s14 = inlined_call_operand.<no memory space> [shape: f32[1,1], index: 14, kind: input, shape index: {}]
  %s15 = inlined_call_operand.hbm [shape: f32[1,8], index: 15, kind: output, shape index: {}]
  %s16 = sld [smem:[#allocation0]]
  $region90: #{tpu_custom_call.1} parent=0
    _
  %s18 = ssub.s32 1, %s16
  %s19 = scalar_select 0, %s18, %s16
  %v20 = vstv %s14
  %21 = vst [vmem:[#allocation2] sm:$0x1] %v20
  $region1: #{tpu_custom_call.1} parent=0
    #allocation3 [shape = 'u8[4096]{0}', space=vmem, size = 0x1000, scoped, tag = 'input window, operand 0, single buffered']
    #allocation4 [shape = 's32[1]{0}', space=sflag, size = 0x4, scoped, tag = 'scoped memory for tpu_custom_call.1']
    #allocation5 [shape = 's32[1]{0}', space=sflag, size = 0x4, scoped, tag = 'scoped memory for tpu_custom_call.1']
    #allocation6 [shape = 'u8[4096]{0}', space=vmem, size = 0x1000, scoped, tag = 'input window, operand 1, single buffered']
    #allocation7 [shape = 's32[1]{0}', space=sflag, size = 0x4, scoped, tag = 'scoped memory for tpu_custom_call.1']
    #allocation8 [shape = 'u8[12288]{0}', space=vmem, size = 0x3000, scoped, tag = 'input window, operand 6, single buffered']
    #allocation9 [shape = 'u8[32768]{0}', space=vmem, size = 0x8000, scoped, tag = 'input window, operand 9, single buffered']
    #allocation10 [shape = 's32[1]{0}', space=sflag, size = 0x4, scoped, tag = 'scoped memory for tpu_custom_call.1']
    #allocation11 [shape = 'u8[32768]{0}', space=vmem, size = 0x8000, scoped, tag = 'input window, operand 11, single buffered']
    #allocation12 [shape = 'u8[512]{0}', space=vmem, size = 0x400, scoped, tag = 'output window, operand 0, single buffered']
    %22 = vsyncpa [#allocation4], 0
    %23 = vsyncpa [#allocation7], 0
    %24 = vsyncpa [#allocation10], 0
    %25 = vsyncpa [#allocation5], 0
    // Predicated region
    $region2: #{tpu_custom_call.1} parent=1 // pred_check
      _
    $region3: #{tpu_custom_call.1} parent=1 // pred_check_branch
      %27 = sbr.rel (0) target = $region5
    $region4: #{tpu_custom_call.1} parent=1 // pred_region
      %s29 = ssub.s32 128, 128
      %30 = vsyncadd [#allocation4], %s29
      %s32 = sshll.u32 [#allocation3], 4
      %s33 = int_to_ptr.vmem [resolvable:$true] %s32
      %35 = dma.hbm_to_vmem [thread:$0]  %s0, 128, %s33, [#allocation4]
    $region5: #{tpu_custom_call.1} parent=1 // pred_fallthru
      _
    // Predicated region
    $region6: #{tpu_custom_call.1} parent=1 // pred_check
      _
    $region7: #{tpu_custom_call.1} parent=1 // pred_check_branch
      %37 = sbr.rel (0) target = $region9
    $region8: #{tpu_custom_call.1} parent=1 // pred_region
      %s39 = ssub.s32 128, 128
      %40 = vsyncadd [#allocation7], %s39
      %s42 = sshll.u32 [#allocation6], 4
      %s43 = int_to_ptr.vmem [resolvable:$true] %s42
      %45 = dma.hbm_to_vmem [thread:$0]  %s1, 128, %s43, [#allocation7]
    $region9: #{tpu_custom_call.1} parent=1 // pred_fallthru
      _
    // Predicated region
    $region10: #{tpu_custom_call.1} parent=1 // pred_check
      _
    $region11: #{tpu_custom_call.1} parent=1 // pred_check_branch
      %47 = sbr.rel (0) target = $region13
    $region12: #{tpu_custom_call.1} parent=1 // pred_region
      _
    $region13: #{tpu_custom_call.1} parent=1 // pred_fallthru
      _
    // Predicated region
    $region14: #{tpu_custom_call.1} parent=1 // pred_check
      _
    $region15: #{tpu_custom_call.1} parent=1 // pred_check_branch
      %49 = sbr.rel (0) target = $region17
    $region16: #{tpu_custom_call.1} parent=1 // pred_region
      _
    $region17: #{tpu_custom_call.1} parent=1 // pred_fallthru
      _
    // Predicated region
    $region18: #{tpu_custom_call.1} parent=1 // pred_check
      _
    $region19: #{tpu_custom_call.1} parent=1 // pred_check_branch
      %51 = sbr.rel (0) target = $region21
    $region20: #{tpu_custom_call.1} parent=1 // pred_region
      _
    $region21: #{tpu_custom_call.1} parent=1 // pred_fallthru
      _
    // Predicated region
    $region22: #{tpu_custom_call.1} parent=1 // pred_check
      _
    $region23: #{tpu_custom_call.1} parent=1 // pred_check_branch
      %53 = sbr.rel (0) target = $region25
    $region24: #{tpu_custom_call.1} parent=1 // pred_region
      _
    $region25: #{tpu_custom_call.1} parent=1 // pred_fallthru
      _
    // Predicated region
    $region26: #{tpu_custom_call.1} parent=1 // pred_check
      _
    $region27: #{tpu_custom_call.1} parent=1 // pred_check_branch
      %55 = sbr.rel (0) target = $region29
    $region28: #{tpu_custom_call.1} parent=1 // pred_region
      %s57 = ssub.s32 384, 384
      %58 = vsyncadd [#allocation7], %s57
      %s59 = sshll.u32 [#allocation8], 4
      %s60 = int_to_ptr.vmem [resolvable:$true] %s59
      %65 = dma.hbm_to_vmem [thread:$0]  %s6, 384, %s60, [#allocation7], 64, 64, 4
    $region29: #{tpu_custom_call.1} parent=1 // pred_fallthru
      _
    // Predicated region
    $region30: #{tpu_custom_call.1} parent=1 // pred_check
      _
    $region31: #{tpu_custom_call.1} parent=1 // pred_check_branch
      %67 = sbr.rel (0) target = $region33
    $region32: #{tpu_custom_call.1} parent=1 // pred_region
      _
    $region33: #{tpu_custom_call.1} parent=1 // pred_fallthru
      _
    // Predicated region
    $region34: #{tpu_custom_call.1} parent=1 // pred_check
      _
    $region35: #{tpu_custom_call.1} parent=1 // pred_check_branch
      %69 = sbr.rel (0) target = $region37
    $region36: #{tpu_custom_call.1} parent=1 // pred_region
      _
    $region37: #{tpu_custom_call.1} parent=1 // pred_fallthru
      _
    // Predicated region
    $region38: #{tpu_custom_call.1} parent=1 // pred_check
      _
    $region39: #{tpu_custom_call.1} parent=1 // pred_check_branch
      %71 = sbr.rel (0) target = $region41
    $region40: #{tpu_custom_call.1} parent=1 // pred_region
      %s73 = ssub.s32 1024, 1024
      %74 = vsyncadd [#allocation10], %s73
      %s75 = sshll.u32 [#allocation9], 4
      %s76 = int_to_ptr.vmem [resolvable:$true] %s75
      %81 = dma.hbm_to_vmem [thread:$0]  %s9, 1024, %s76, [#allocation10], 64, 64, 4
    $region41: #{tpu_custom_call.1} parent=1 // pred_fallthru
      _
    // Predicated region
    $region42: #{tpu_custom_call.1} parent=1 // pred_check
      _
    $region43: #{tpu_custom_call.1} parent=1 // pred_check_branch
      %83 = sbr.rel (0) target = $region45
    $region44: #{tpu_custom_call.1} parent=1 // pred_region
      _
    $region45: #{tpu_custom_call.1} parent=1 // pred_fallthru
      _
    // Predicated region
    $region46: #{tpu_custom_call.1} parent=1 // pred_check
      _
    $region47: #{tpu_custom_call.1} parent=1 // pred_check_branch
      %85 = sbr.rel (0) target = $region49
    $region48: #{tpu_custom_call.1} parent=1 // pred_region
      %s87 = ssub.s32 1024, 1024
      %88 = vsyncadd [#allocation10], %s87
      %s89 = sshll.u32 [#allocation11], 4
      %s90 = int_to_ptr.vmem [resolvable:$true] %s89
      %95 = dma.hbm_to_vmem [thread:$0]  %s11, 1024, %s90, [#allocation10], 64, 64, 4
    $region49: #{tpu_custom_call.1} parent=1 // pred_fallthru
      _
    // Predicated region
    $region50: #{tpu_custom_call.1} parent=1 // pred_check
      _
    $region51: #{tpu_custom_call.1} parent=1 // pred_check_branch
      %97 = sbr.rel (0) target = $region53
    $region52: #{tpu_custom_call.1} parent=1 // pred_region
      _
    $region53: #{tpu_custom_call.1} parent=1 // pred_fallthru
      _
    // Predicated region
    $region54: #{tpu_custom_call.1} parent=1 // pred_check
      _
    $region55: #{tpu_custom_call.1} parent=1 // pred_check_branch
      %99 = sbr.rel (0) target = $region57
    $region56: #{tpu_custom_call.1} parent=1 // pred_region
      _
    $region57: #{tpu_custom_call.1} parent=1 // pred_fallthru
      _
    // Predicated region
    $region58: #{tpu_custom_call.1} parent=1 // pred_check
      _
    $region59: #{tpu_custom_call.1} parent=1 // pred_check_branch
      %101 = sbr.rel (0) target = $region61
    $region60: #{tpu_custom_call.1} parent=1 // pred_region
      _
    $region61: #{tpu_custom_call.1} parent=1 // pred_fallthru
      _
    // Predicated region
    $region62: #{tpu_custom_call.1} parent=1 // pred_check
      _
    $region63: #{tpu_custom_call.1} parent=1 // pred_check_branch
      %103 = sbr.rel (0) target = $region65
    $region64: #{tpu_custom_call.1} parent=1 // pred_region
      %104 = dma.done [#allocation4], 128
    $region65: #{tpu_custom_call.1} parent=1 // pred_fallthru
      _
    // Predicated region
    $region66: #{tpu_custom_call.1} parent=1 // pred_check
      _
    $region67: #{tpu_custom_call.1} parent=1 // pred_check_branch
      %106 = sbr.rel (0) target = $region69
    $region68: #{tpu_custom_call.1} parent=1 // pred_region
      %107 = dma.done [#allocation7], 128
    $region69: #{tpu_custom_call.1} parent=1 // pred_fallthru
      _
    // Predicated region
    $region70: #{tpu_custom_call.1} parent=1 // pred_check
      _
    $region71: #{tpu_custom_call.1} parent=1 // pred_check_branch
      %109 = sbr.rel (0) target = $region73
    $region72: #{tpu_custom_call.1} parent=1 // pred_region
      %110 = dma.done [#allocation7], 384
    $region73: #{tpu_custom_call.1} parent=1 // pred_fallthru
      _
    // Predicated region
    $region74: #{tpu_custom_call.1} parent=1 // pred_check
      _
    $region75: #{tpu_custom_call.1} parent=1 // pred_check_branch
      %112 = sbr.rel (0) target = $region77
    $region76: #{tpu_custom_call.1} parent=1 // pred_region
      %113 = dma.done [#allocation10], 1024
    $region77: #{tpu_custom_call.1} parent=1 // pred_fallthru
      _
    // Predicated region
    $region78: #{tpu_custom_call.1} parent=1 // pred_check
      _
    $region79: #{tpu_custom_call.1} parent=1 // pred_check_branch
      %115 = sbr.rel (0) target = $region81
    $region80: #{tpu_custom_call.1} parent=1 // pred_region
      %116 = dma.done [#allocation10], 1024
    $region81: #{tpu_custom_call.1} parent=1 // pred_fallthru
      _
    %v118 = vld [vmem:[#allocation3] sm:$0xff]
    %v119 = vld [vmem:[#allocation6] sm:$0xff]
    %vm120 = vcmask 392192
    %v121 = vsel %vm120, %v118, 0.0
    %122 = vadd.xlane.f32.xlu0 %v121
    %v123 = vpop.xlane.xlu0 %122
    %vm124 = vcmask 130048
    %v125 = vsel %vm124, %v119, 0.0
    %126 = vadd.xlane.f32.xlu0 %v125
    %v127 = vpop.xlane.xlu0 %126
    %v128 = vadd.f32 %v123, %v127
    %v129 = vmul.f32 %v118, %v118
    %v130 = vsel %vm120, %v129, 0.0
    %131 = vadd.xlane.f32.xlu0 %v130
    %v132 = vpop.xlane.xlu0 %131
    %v133 = vmul.f32 %v119, %v119
    %v134 = vsel %vm124, %v133, 0.0
    %135 = vadd.xlane.f32.xlu0 %v134
    %v136 = vpop.xlane.xlu0 %135
    %v137 = vadd.f32 %v132, %v136
    %v138 = vmul.f32 %v128, 0.015625
    %v139 = vmul.f32 %v137, 0.015625
    %v140 = vmul.f32 %v138, %v138
    %v141 = vsub.f32 %v139, %v140
    %v142 = vmax.f32 %v141, 0.0
    %v143 = vadd.f32 %v142, 1e-05
    %v144 = vrsqrt.pop %v143
    %v145 = vsub.f32 %v118, %v138
    %v146 = vmul.f32 %v145, %v144
    %v147 = vld [vmem:[%s2] sm:$0x1]
    %v149 = vlaneseq
    %v150 = vshrl.u32 %v149, 7
    %v151 = vsub.s32 0, %v150
    %v152 = vrot.slane %v147, %v151
    %v154 = vmul.f32 %v146, %v152
    %v155 = vld [vmem:[%s3] sm:$0x1]
    %v157 = vlaneseq
    %v158 = vshrl.u32 %v157, 7
    %v159 = vsub.s32 0, %v158
    %v160 = vrot.slane %v155, %v159
    %v162 = vadd.f32 %v154, %v160
    %v163 = vsub.f32 %v119, %v138
    %v164 = vmul.f32 %v163, %v144
    %v165 = vld [vmem:[%s4] sm:$0x1]
    %v167 = vlaneseq
    %v168 = vshrl.u32 %v167, 7
    %v169 = vsub.s32 0, %v168
    %v170 = vrot.slane %v165, %v169
    %v172 = vmul.f32 %v164, %v170
    %v173 = vld [vmem:[%s5] sm:$0x1]
    %v175 = vlaneseq
    %v176 = vshrl.u32 %v175, 7
    %v177 = vsub.s32 0, %v176
    %v178 = vrot.slane %v173, %v177
    %v180 = vadd.f32 %v172, %v178
    %v181 = vpack.c.bf16 %v162, %v162
    %v182 = vld [vmem:[#allocation8] sm:$0xf]
    %v183 = vld [vmem:[#allocation8 + $0x4] sm:$0xf]
    %v184 = vld [vmem:[#allocation8 + $0x8] sm:$0xf]
    %v185 = vld [vmem:[#allocation8 + $0xc] sm:$0xf]
    %v186 = vld [vmem:[#allocation8 + $0x10] sm:$0xf]
    %v187 = vld [vmem:[#allocation8 + $0x14] sm:$0xf]
    %v188 = vpack.c.bf16 %v180, %v180
    %v189 = vld [vmem:[%s7] sm:$0xf]
    %v190 = vld [vmem:[%s7 + $0x4] sm:$0xf]
    %v193 = vunpack.c.l.b16 %v189
    %v194 = vunpack.c.l.b16 %v190
    %v195 = vpack.c.b16 %v194, %v193
    %v198 = vsel %vm124, %v188, 0
    %200 = vmatprep.subr.bf16.mxu0 0
    %201 = vmatpush1.bf16.msra.mxu0 0
    %202 = vmatprep.subr.bf16.mxu0 0
    %203 = vmatpush1.bf16.msra.mxu0 0
    %204 = vmatprep.subr.bf16.mxu0 0
    %205 = vmatpush1.bf16.msra.mxu0 0
    %206 = vmatprep.subr.bf16.mxu0 0
    %207 = vmatpush1.bf16.msra.mxu0 0
    %208 = vmatprep.subr.bf16.mxu0 0
    %209 = vmatpush1.bf16.msra.mxu0 0
    %210 = vmatprep.subr.bf16.mxu0 0
    %211 = vmatpush1.bf16.msra.mxu0 0
    %212 = vmatprep.subr.bf16.mxu0 0
    %213 = vmatpush1.bf16.msra.mxu0 0
    %214 = vmatprep.subr.bf16.mxu0 0
    %215 = vmatpush1.bf16.msra.mxu0 %v195
    %216 = vmatprep.subr.bf16.mxu0 0
    %217 = vmatpush2.bf16.msra.mxu0 0
    %218 = vmatprep.subr.bf16.mxu0 0
    %219 = vmatpush2.bf16.msra.mxu0 0
    %220 = vmatprep.subr.bf16.mxu0 0
    %221 = vmatpush2.bf16.msra.mxu0 0
    %222 = vmatprep.subr.bf16.mxu0 0
    %223 = vmatpush2.bf16.msra.mxu0 0
    %224 = vmatprep.subr.bf16.mxu0 0
    %225 = vmatpush2.bf16.msra.mxu0 0
    %226 = vmatprep.subr.bf16.mxu0 0
    %227 = vmatpush2.bf16.msra.mxu0 0
    %228 = vmatprep.subr.bf16.mxu0 0
    %229 = vmatpush2.bf16.msra.mxu0 0
    %230 = vmatprep.subr.bf16.mxu0 0
    %231 = vmatpush2.bf16.msra.mxu0 0
    %232 = vmatprep.mubr.bf16.mxu0 0
    %233 = vmatmul.mubr.bf16.gmra.mxu0 %v198
    %v234 = vpop.f32.mrf.mxu0
    %v235 = vadd.f32 0.0, %v234
    %v236 = vpop.f32.mrf.mxu0
    %v237 = vpop.f32.mrf.mxu0
    %v238 = vpop.f32.mrf.mxu0
    %239 = vdwg.mxu0
    %v246 = vunpack.c.l.b16 %v182
    %v247 = vunpack.c.l.b16 %v183
    %v248 = vunpack.c.l.b16 %v184
    %v249 = vunpack.c.l.b16 %v185
    %v250 = vunpack.c.l.b16 %v186
    %v251 = vunpack.c.l.b16 %v187
    %v252 = vpack.c.b16 %v247, %v246
    %v253 = vpack.c.b16 %v249, %v248
    %v254 = vpack.c.b16 %v251, %v250
    %v259 = vsel %vm120, %v181, 0
    %261 = vmatprep.subr.bf16.mxu0 0
    %262 = vmatpush1.bf16.msra.mxu0 0
    %263 = vmatprep.subr.bf16.mxu0 0
    %264 = vmatpush1.bf16.msra.mxu0 0
    %265 = vmatprep.subr.bf16.mxu0 0
    %266 = vmatpush1.bf16.msra.mxu0 0
    %267 = vmatprep.subr.bf16.mxu0 0
    %268 = vmatpush1.bf16.msra.mxu0 0
    %269 = vmatprep.subr.bf16.mxu0 0
    %270 = vmatpush1.bf16.msra.mxu0 0
    %271 = vmatprep.subr.bf16.mxu0 0
    %272 = vmatpush1.bf16.msra.mxu0 %v254
    %273 = vmatprep.subr.bf16.mxu0 0
    %274 = vmatpush1.bf16.msra.mxu0 %v253
    %275 = vmatprep.subr.bf16.mxu0 0
    %276 = vmatpush1.bf16.msra.mxu0 %v252
    %277 = vmatprep.subr.bf16.mxu0 0
    %278 = vmatpush2.bf16.msra.mxu0 0
    %279 = vmatprep.subr.bf16.mxu0 0
    %280 = vmatpush2.bf16.msra.mxu0 0
    %281 = vmatprep.subr.bf16.mxu0 0
    %282 = vmatpush2.bf16.msra.mxu0 0
    %283 = vmatprep.subr.bf16.mxu0 0
    %284 = vmatpush2.bf16.msra.mxu0 0
    %285 = vmatprep.subr.bf16.mxu0 0
    %286 = vmatpush2.bf16.msra.mxu0 0
    %287 = vmatprep.subr.bf16.mxu0 0
    %288 = vmatpush2.bf16.msra.mxu0 0
    %289 = vmatprep.subr.bf16.mxu0 0
    %290 = vmatpush2.bf16.msra.mxu0 0
    %291 = vmatprep.subr.bf16.mxu0 0
    %292 = vmatpush2.bf16.msra.mxu0 0
    %293 = vmatprep.mubr.bf16.mxu0 0
    %294 = vmatmul.mubr.bf16.gmra.mxu0 %v259
    %v295 = vpop.f32.mrf.mxu0
    %v296 = vadd.f32 %v235, %v295
    %v297 = vpop.f32.mrf.mxu0
    %v298 = vpop.f32.mrf.mxu0
    %v299 = vpop.f32.mrf.mxu0
    %300 = vdwg.mxu0
    %v301 = vld [vmem:[%s8] sm:$0x1]
    %v303 = vlaneseq
    %v304 = vshrl.u32 %v303, 7
    %v305 = vsub.s32 0, %v304
    %v306 = vrot.slane %v301, %v305
    %v308 = vadd.f32 %v296, %v306
    %v309 = vmax.f32 %v308, 0.0
    %v310 = vpack.c.bf16 %v309, %v309
    %v311 = vld [vmem:[#allocation9] sm:$0xf]
    %v312 = vld [vmem:[#allocation9 + $0x4] sm:$0xf]
    %v313 = vld [vmem:[#allocation9 + $0x8] sm:$0xf]
    %v314 = vld [vmem:[#allocation9 + $0xc] sm:$0xf]
    %v315 = vld [vmem:[#allocation9 + $0x10] sm:$0xf]
    %v316 = vld [vmem:[#allocation9 + $0x14] sm:$0xf]
    %v317 = vld [vmem:[#allocation9 + $0x18] sm:$0xf]
    %v318 = vld [vmem:[#allocation9 + $0x1c] sm:$0xf]
    %v319 = vld [vmem:[#allocation9 + $0x20] sm:$0xf]
    %v320 = vld [vmem:[#allocation9 + $0x24] sm:$0xf]
    %v321 = vld [vmem:[#allocation9 + $0x28] sm:$0xf]
    %v322 = vld [vmem:[#allocation9 + $0x2c] sm:$0xf]
    %v323 = vld [vmem:[#allocation9 + $0x30] sm:$0xf]
    %v324 = vld [vmem:[#allocation9 + $0x34] sm:$0xf]
    %v325 = vld [vmem:[#allocation9 + $0x38] sm:$0xf]
    %v326 = vld [vmem:[#allocation9 + $0x3c] sm:$0xf]
    %v327 = vld [vmem:[%s10] sm:$0x1]
    %v329 = vlaneseq
    %v330 = vshrl.u32 %v329, 7
    %v331 = vsub.s32 0, %v330
    %v332 = vrot.slane %v327, %v331
    %v350 = vunpack.c.l.b16 %v311
    %v351 = vunpack.c.l.b16 %v312
    %v352 = vunpack.c.l.b16 %v313
    %v353 = vunpack.c.l.b16 %v314
    %v354 = vunpack.c.l.b16 %v315
    %v355 = vunpack.c.l.b16 %v316
    %v356 = vunpack.c.l.b16 %v317
    %v357 = vunpack.c.l.b16 %v318
    %v358 = vunpack.c.l.b16 %v319
    %v359 = vunpack.c.l.b16 %v320
    %v360 = vunpack.c.l.b16 %v321
    %v361 = vunpack.c.l.b16 %v322
    %v362 = vunpack.c.l.b16 %v323
    %v363 = vunpack.c.l.b16 %v324
    %v364 = vunpack.c.l.b16 %v325
    %v365 = vunpack.c.l.b16 %v326
    %v366 = vpack.c.b16 %v351, %v350
    %v367 = vpack.c.b16 %v353, %v352
    %v368 = vpack.c.b16 %v355, %v354
    %v369 = vpack.c.b16 %v357, %v356
    %v370 = vpack.c.b16 %v359, %v358
    %v371 = vpack.c.b16 %v361, %v360
    %v372 = vpack.c.b16 %v363, %v362
    %v373 = vpack.c.b16 %v365, %v364
    %382 = vmatprep.subr.bf16.mxu0 0
    %383 = vmatpush1.bf16.msra.mxu0 %v373
    %384 = vmatprep.subr.bf16.mxu0 0
    %385 = vmatpush1.bf16.msra.mxu0 %v372
    %386 = vmatprep.subr.bf16.mxu0 0
    %387 = vmatpush1.bf16.msra.mxu0 %v371
    %388 = vmatprep.subr.bf16.mxu0 0
    %389 = vmatpush1.bf16.msra.mxu0 %v370
    %390 = vmatprep.subr.bf16.mxu0 0
    %391 = vmatpush1.bf16.msra.mxu0 %v369
    %392 = vmatprep.subr.bf16.mxu0 0
    %393 = vmatpush1.bf16.msra.mxu0 %v368
    %394 = vmatprep.subr.bf16.mxu0 0
    %395 = vmatpush1.bf16.msra.mxu0 %v367
    %396 = vmatprep.subr.bf16.mxu0 0
    %397 = vmatpush1.bf16.msra.mxu0 %v366
    %398 = vmatprep.subr.bf16.mxu0 0
    %399 = vmatpush2.bf16.msra.mxu0 0
    %400 = vmatprep.subr.bf16.mxu0 0
    %401 = vmatpush2.bf16.msra.mxu0 0
    %402 = vmatprep.subr.bf16.mxu0 0
    %403 = vmatpush2.bf16.msra.mxu0 0
    %404 = vmatprep.subr.bf16.mxu0 0
    %405 = vmatpush2.bf16.msra.mxu0 0
    %406 = vmatprep.subr.bf16.mxu0 0
    %407 = vmatpush2.bf16.msra.mxu0 0
    %408 = vmatprep.subr.bf16.mxu0 0
    %409 = vmatpush2.bf16.msra.mxu0 0
    %410 = vmatprep.subr.bf16.mxu0 0
    %411 = vmatpush2.bf16.msra.mxu0 0
    %412 = vmatprep.subr.bf16.mxu0 0
    %413 = vmatpush2.bf16.msra.mxu0 0
    %414 = vmatprep.mubr.bf16.mxu0 0
    %415 = vmatmul.mubr.bf16.gmra.mxu0 %v310
    %v416 = vpop.f32.mrf.mxu0
    %v417 = vadd.f32 %v332, %v416
    %v418 = vpop.f32.mrf.mxu0
    %v419 = vpop.f32.mrf.mxu0
    %v420 = vpop.f32.mrf.mxu0
    %421 = vdwg.mxu0
    %v422 = vmax.f32 %v417, 0.0
    %v423 = vpack.c.bf16 %v422, %v422
    %v424 = vld [vmem:[#allocation11] sm:$0xf]
    %v425 = vld [vmem:[#allocation11 + $0x4] sm:$0xf]
    %v426 = vld [vmem:[#allocation11 + $0x8] sm:$0xf]
    %v427 = vld [vmem:[#allocation11 + $0xc] sm:$0xf]
    %v428 = vld [vmem:[#allocation11 + $0x10] sm:$0xf]
    %v429 = vld [vmem:[#allocation11 + $0x14] sm:$0xf]
    %v430 = vld [vmem:[#allocation11 + $0x18] sm:$0xf]
    %v431 = vld [vmem:[#allocation11 + $0x1c] sm:$0xf]
    %v432 = vld [vmem:[#allocation11 + $0x20] sm:$0xf]
    %v433 = vld [vmem:[#allocation11 + $0x24] sm:$0xf]
    %v434 = vld [vmem:[#allocation11 + $0x28] sm:$0xf]
    %v435 = vld [vmem:[#allocation11 + $0x2c] sm:$0xf]
    %v436 = vld [vmem:[#allocation11 + $0x30] sm:$0xf]
    %v437 = vld [vmem:[#allocation11 + $0x34] sm:$0xf]
    %v438 = vld [vmem:[#allocation11 + $0x38] sm:$0xf]
    %v439 = vld [vmem:[#allocation11 + $0x3c] sm:$0xf]
    %v440 = vld [vmem:[%s12] sm:$0x1]
    %v442 = vlaneseq
    %v443 = vshrl.u32 %v442, 7
    %v444 = vsub.s32 0, %v443
    %v445 = vrot.slane %v440, %v444
    %v463 = vunpack.c.l.b16 %v424
    %v464 = vunpack.c.l.b16 %v425
    %v465 = vunpack.c.l.b16 %v426
    %v466 = vunpack.c.l.b16 %v427
    %v467 = vunpack.c.l.b16 %v428
    %v468 = vunpack.c.l.b16 %v429
    %v469 = vunpack.c.l.b16 %v430
    %v470 = vunpack.c.l.b16 %v431
    %v471 = vunpack.c.l.b16 %v432
    %v472 = vunpack.c.l.b16 %v433
    %v473 = vunpack.c.l.b16 %v434
    %v474 = vunpack.c.l.b16 %v435
    %v475 = vunpack.c.l.b16 %v436
    %v476 = vunpack.c.l.b16 %v437
    %v477 = vunpack.c.l.b16 %v438
    %v478 = vunpack.c.l.b16 %v439
    %v479 = vpack.c.b16 %v464, %v463
    %v480 = vpack.c.b16 %v466, %v465
    %v481 = vpack.c.b16 %v468, %v467
    %v482 = vpack.c.b16 %v470, %v469
    %v483 = vpack.c.b16 %v472, %v471
    %v484 = vpack.c.b16 %v474, %v473
    %v485 = vpack.c.b16 %v476, %v475
    %v486 = vpack.c.b16 %v478, %v477
    %495 = vmatprep.subr.bf16.mxu0 0
    %496 = vmatpush1.bf16.msra.mxu0 %v486
    %497 = vmatprep.subr.bf16.mxu0 0
    %498 = vmatpush1.bf16.msra.mxu0 %v485
    %499 = vmatprep.subr.bf16.mxu0 0
    %500 = vmatpush1.bf16.msra.mxu0 %v484
    %501 = vmatprep.subr.bf16.mxu0 0
    %502 = vmatpush1.bf16.msra.mxu0 %v483
    %503 = vmatprep.subr.bf16.mxu0 0
    %504 = vmatpush1.bf16.msra.mxu0 %v482
    %505 = vmatprep.subr.bf16.mxu0 0
    %506 = vmatpush1.bf16.msra.mxu0 %v481
    %507 = vmatprep.subr.bf16.mxu0 0
    %508 = vmatpush1.bf16.msra.mxu0 %v480
    %509 = vmatprep.subr.bf16.mxu0 0
    %510 = vmatpush1.bf16.msra.mxu0 %v479
    %511 = vmatprep.subr.bf16.mxu0 0
    %512 = vmatpush2.bf16.msra.mxu0 0
    %513 = vmatprep.subr.bf16.mxu0 0
    %514 = vmatpush2.bf16.msra.mxu0 0
    %515 = vmatprep.subr.bf16.mxu0 0
    %516 = vmatpush2.bf16.msra.mxu0 0
    %517 = vmatprep.subr.bf16.mxu0 0
    %518 = vmatpush2.bf16.msra.mxu0 0
    %519 = vmatprep.subr.bf16.mxu0 0
    %520 = vmatpush2.bf16.msra.mxu0 0
    %521 = vmatprep.subr.bf16.mxu0 0
    %522 = vmatpush2.bf16.msra.mxu0 0
    %523 = vmatprep.subr.bf16.mxu0 0
    %524 = vmatpush2.bf16.msra.mxu0 0
    %525 = vmatprep.subr.bf16.mxu0 0
    %526 = vmatpush2.bf16.msra.mxu0 0
    %527 = vmatprep.mubr.bf16.mxu0 0
    %528 = vmatmul.mubr.bf16.gmra.mxu0 %v423
    %v529 = vpop.f32.mrf.mxu0
    %v530 = vadd.f32 %v445, %v529
    %v531 = vpop.f32.mrf.mxu0
    %v532 = vpop.f32.mrf.mxu0
    %v533 = vpop.f32.mrf.mxu0
    %534 = vdwg.mxu0
    %v535 = vmax.f32 %v530, 0.0
    %v536 = vld [vmem:[%s13] sm:$0x1]
    %v537 = vpack.c.bf16 %v535, %v535
    %v538 = vld [vmem:[#allocation2] sm:$0x1]
    %540 = vset.pattern.permute.xlu0 0
    %541 = vperm.xlu0 %540, %v538
    %v542 = vpop.permute.xlu0 %541
    %v544 = vlaneseq
    %v545 = vshrl.u32 %v544, 7
    %v546 = vsub.s32 0, %v545
    %v547 = vrot.slane %v542, %v546
    %548 = vmatprep.subr.bf16.mxu0 0
    %549 = vmatpush1.bf16.xpose.msra.mxu0 0
    %550 = vmatprep.subr.bf16.mxu0 0
    %551 = vmatpush1.bf16.xpose.msra.mxu0 0
    %552 = vmatprep.subr.bf16.mxu0 0
    %553 = vmatpush1.bf16.xpose.msra.mxu0 0
    %554 = vmatprep.subr.bf16.mxu0 0
    %555 = vmatpush1.bf16.xpose.msra.mxu0 0
    %556 = vmatprep.subr.bf16.mxu0 0
    %557 = vmatpush1.bf16.xpose.msra.mxu0 0
    %558 = vmatprep.subr.bf16.mxu0 0
    %559 = vmatpush1.bf16.xpose.msra.mxu0 0
    %560 = vmatprep.subr.bf16.mxu0 0
    %561 = vmatpush1.bf16.xpose.msra.mxu0 0
    %562 = vmatprep.subr.bf16.mxu0 0
    %563 = vmatpush1.bf16.xpose.msra.mxu0 %v537
    %564 = vmatprep.subr.bf16.mxu0 0
    %565 = vmatpush2.bf16.xpose.msra.mxu0 0
    %566 = vmatprep.subr.bf16.mxu0 0
    %567 = vmatpush2.bf16.xpose.msra.mxu0 0
    %568 = vmatprep.subr.bf16.mxu0 0
    %569 = vmatpush2.bf16.xpose.msra.mxu0 0
    %570 = vmatprep.subr.bf16.mxu0 0
    %571 = vmatpush2.bf16.xpose.msra.mxu0 0
    %572 = vmatprep.subr.bf16.mxu0 0
    %573 = vmatpush2.bf16.xpose.msra.mxu0 0
    %574 = vmatprep.subr.bf16.mxu0 0
    %575 = vmatpush2.bf16.xpose.msra.mxu0 0
    %576 = vmatprep.subr.bf16.mxu0 0
    %577 = vmatpush2.bf16.xpose.msra.mxu0 0
    %578 = vmatprep.subr.bf16.mxu0 0
    %579 = vmatpush2.bf16.xpose.msra.mxu0 0
    %580 = vmatprep.mubr.bf16.mxu0 0
    %581 = vmatmul.mubr.bf16.gmra.mxu0 %v536
    %v582 = vpop.f32.mrf.mxu0
    %v583 = vadd.f32 %v547, %v582
    %v584 = vpop.f32.mrf.mxu0
    %v585 = vpop.f32.mrf.mxu0
    %v586 = vpop.f32.mrf.mxu0
    %587 = vdwg.mxu0
    %vm588 = vcmask 57344
    %589 = vst.msk [vmem:[#allocation12] sm:$0x1] %vm588, %v583
    // Predicated region
    $region82: #{tpu_custom_call.1} parent=1 // pred_check
      _
    $region83: #{tpu_custom_call.1} parent=1 // pred_check_branch
      %591 = sbr.rel (0) target = $region85
    $region84: #{tpu_custom_call.1} parent=1 // pred_region
      %s593 = ssub.s32 16, 16
      %594 = vsyncadd [#allocation5], %s593
      %s596 = sshll.u32 [#allocation12], 4
      %s597 = int_to_ptr.vmem [resolvable:$true] %s596
      %599 = dma.vmem_to_hbm [thread:$0]  %s597, 16, %s15, [#allocation5]
    $region85: #{tpu_custom_call.1} parent=1 // pred_fallthru
      _
    // Predicated region
    $region86: #{tpu_custom_call.1} parent=1 // pred_check
      _
    $region87: #{tpu_custom_call.1} parent=1 // pred_check_branch
      %601 = sbr.rel (0) target = $region89
    $region88: #{tpu_custom_call.1} parent=1 // pred_region
      %602 = dma.done [#allocation5], 16
    $region89: #{tpu_custom_call.1} parent=1 // pred_fallthru
      _
    %603 = vsyncpa [#allocation4], 1
    %604 = vsyncpa [#allocation7], 1
    %605 = vsyncpa [#allocation10], 1
    %606 = vsyncpa [#allocation5], 1

// kernel: tpu_custom_call.1
$region0: #{tpu_custom_call.1}
  #allocation0 [shape = 'u32[]', space=smem, size = 0x4, offset = 0x4, fixed_abs, tag = 'smem constant byte address 0x4 - core index']
  #allocation1 [shape = 'u32[144,128]{1,0:T(1,128)}', space=vmem, size = 0x12000, scoped, tag = 'internal scratch']
  #allocation2 [shape = 'f32[1,1]{1,0:T(1,128)S(1)}', space=vmem, size = 0x200, scoped, tag = 'scoped memory for tpu_custom_call.1']
  %s0 = inlined_call_operand.hbm [shape: f32[8,48], index: 0, kind: input, shape index: {}]
  %s1 = inlined_call_operand.hbm [shape: f32[8,16], index: 1, kind: input, shape index: {}]
  %s2 = inlined_call_operand.vmem [shape: f32[1,48], index: 2, kind: input, shape index: {}]
  %s3 = inlined_call_operand.vmem [shape: f32[1,48], index: 3, kind: input, shape index: {}]
  %s4 = inlined_call_operand.vmem [shape: f32[1,16], index: 4, kind: input, shape index: {}]
  %s5 = inlined_call_operand.vmem [shape: f32[1,16], index: 5, kind: input, shape index: {}]
  %s6 = inlined_call_operand.hbm [shape: bf16[48,128], index: 6, kind: input, shape index: {}]
  %s7 = inlined_call_operand.vmem [shape: bf16[16,128], index: 7, kind: input, shape index: {}]
  %s8 = inlined_call_operand.vmem [shape: f32[1,128], index: 8, kind: input, shape index: {}]
  %s9 = inlined_call_operand.hbm [shape: bf16[128,128], index: 9, kind: input, shape index: {}]
  %s10 = inlined_call_operand.vmem [shape: f32[1,128], index: 10, kind: input, shape index: {}]
  %s11 = inlined_call_operand.hbm [shape: bf16[128,128], index: 11, kind: input, shape index: {}]
  %s12 = inlined_call_operand.vmem [shape: f32[1,128], index: 12, kind: input, shape index: {}]
  %s13 = inlined_call_operand.vmem [shape: bf16[1,128], index: 13, kind: input, shape index: {}]
  %s14 = inlined_call_operand.<no memory space> [shape: f32[1,1], index: 14, kind: input, shape index: {}]
  %s15 = inlined_call_operand.hbm [shape: f32[1,8], index: 15, kind: output, shape index: {}]
  %s16 = sld [smem:[#allocation0]]
  $region90: #{tpu_custom_call.1} parent=0
    _
  %s18 = ssub.s32 1, %s16
  %s19 = scalar_select 0, %s18, %s16
  %v20 = vstv %s14
  %21 = vst [vmem:[#allocation2] sm:$0x1] %v20
  $region1: #{tpu_custom_call.1} parent=0
    #allocation3 [shape = 'u8[4096]{0}', space=vmem, size = 0x1000, scoped, tag = 'input window, operand 0, single buffered']
    #allocation4 [shape = 's32[1]{0}', space=sflag, size = 0x4, scoped, tag = 'scoped memory for tpu_custom_call.1']
    #allocation5 [shape = 's32[1]{0}', space=sflag, size = 0x4, scoped, tag = 'scoped memory for tpu_custom_call.1']
    #allocation6 [shape = 'u8[4096]{0}', space=vmem, size = 0x1000, scoped, tag = 'input window, operand 1, single buffered']
    #allocation7 [shape = 's32[1]{0}', space=sflag, size = 0x4, scoped, tag = 'scoped memory for tpu_custom_call.1']
    #allocation8 [shape = 'u8[12288]{0}', space=vmem, size = 0x3000, scoped, tag = 'input window, operand 6, single buffered']
    #allocation9 [shape = 'u8[32768]{0}', space=vmem, size = 0x8000, scoped, tag = 'input window, operand 9, single buffered']
    #allocation10 [shape = 's32[1]{0}', space=sflag, size = 0x4, scoped, tag = 'scoped memory for tpu_custom_call.1']
    #allocation11 [shape = 'u8[32768]{0}', space=vmem, size = 0x8000, scoped, tag = 'input window, operand 11, single buffered']
    #allocation12 [shape = 'u8[512]{0}', space=vmem, size = 0x400, scoped, tag = 'output window, operand 0, single buffered']
    %22 = vsyncpa [#allocation4], 0
    %23 = vsyncpa [#allocation7], 0
    %24 = vsyncpa [#allocation10], 0
    %25 = vsyncpa [#allocation5], 0
    // Predicated region
    $region2: #{tpu_custom_call.1} parent=1 // pred_check
      _
    $region3: #{tpu_custom_call.1} parent=1 // pred_check_branch
      %27 = sbr.rel (0) target = $region5
    $region4: #{tpu_custom_call.1} parent=1 // pred_region
      %s29 = ssub.s32 128, 128
      %30 = vsyncadd [#allocation4], %s29
      %s32 = sshll.u32 [#allocation3], 4
      %s33 = int_to_ptr.vmem [resolvable:$true] %s32
      %35 = dma.hbm_to_vmem [thread:$0]  %s0, 128, %s33, [#allocation4]
    $region5: #{tpu_custom_call.1} parent=1 // pred_fallthru
      _
    // Predicated region
    $region6: #{tpu_custom_call.1} parent=1 // pred_check
      _
    $region7: #{tpu_custom_call.1} parent=1 // pred_check_branch
      %37 = sbr.rel (0) target = $region9
    $region8: #{tpu_custom_call.1} parent=1 // pred_region
      %s39 = ssub.s32 128, 128
      %40 = vsyncadd [#allocation7], %s39
      %s42 = sshll.u32 [#allocation6], 4
      %s43 = int_to_ptr.vmem [resolvable:$true] %s42
      %45 = dma.hbm_to_vmem [thread:$0]  %s1, 128, %s43, [#allocation7]
    $region9: #{tpu_custom_call.1} parent=1 // pred_fallthru
      _
    // Predicated region
    $region10: #{tpu_custom_call.1} parent=1 // pred_check
      _
    $region11: #{tpu_custom_call.1} parent=1 // pred_check_branch
      %47 = sbr.rel (0) target = $region13
    $region12: #{tpu_custom_call.1} parent=1 // pred_region
      _
    $region13: #{tpu_custom_call.1} parent=1 // pred_fallthru
      _
    // Predicated region
    $region14: #{tpu_custom_call.1} parent=1 // pred_check
      _
    $region15: #{tpu_custom_call.1} parent=1 // pred_check_branch
      %49 = sbr.rel (0) target = $region17
    $region16: #{tpu_custom_call.1} parent=1 // pred_region
      _
    $region17: #{tpu_custom_call.1} parent=1 // pred_fallthru
      _
    // Predicated region
    $region18: #{tpu_custom_call.1} parent=1 // pred_check
      _
    $region19: #{tpu_custom_call.1} parent=1 // pred_check_branch
      %51 = sbr.rel (0) target = $region21
    $region20: #{tpu_custom_call.1} parent=1 // pred_region
      _
    $region21: #{tpu_custom_call.1} parent=1 // pred_fallthru
      _
    // Predicated region
    $region22: #{tpu_custom_call.1} parent=1 // pred_check
      _
    $region23: #{tpu_custom_call.1} parent=1 // pred_check_branch
      %53 = sbr.rel (0) target = $region25
    $region24: #{tpu_custom_call.1} parent=1 // pred_region
      _
    $region25: #{tpu_custom_call.1} parent=1 // pred_fallthru
      _
    // Predicated region
    $region26: #{tpu_custom_call.1} parent=1 // pred_check
      _
    $region27: #{tpu_custom_call.1} parent=1 // pred_check_branch
      %55 = sbr.rel (0) target = $region29
    $region28: #{tpu_custom_call.1} parent=1 // pred_region
      %s57 = ssub.s32 384, 384
      %58 = vsyncadd [#allocation7], %s57
      %s59 = sshll.u32 [#allocation8], 4
      %s60 = int_to_ptr.vmem [resolvable:$true] %s59
      %65 = dma.hbm_to_vmem [thread:$0]  %s6, 384, %s60, [#allocation7], 64, 64, 4
    $region29: #{tpu_custom_call.1} parent=1 // pred_fallthru
      _
    // Predicated region
    $region30: #{tpu_custom_call.1} parent=1 // pred_check
      _
    $region31: #{tpu_custom_call.1} parent=1 // pred_check_branch
      %67 = sbr.rel (0) target = $region33
    $region32: #{tpu_custom_call.1} parent=1 // pred_region
      _
    $region33: #{tpu_custom_call.1} parent=1 // pred_fallthru
      _
    // Predicated region
    $region34: #{tpu_custom_call.1} parent=1 // pred_check
      _
    $region35: #{tpu_custom_call.1} parent=1 // pred_check_branch
      %69 = sbr.rel (0) target = $region37
    $region36: #{tpu_custom_call.1} parent=1 // pred_region
      _
    $region37: #{tpu_custom_call.1} parent=1 // pred_fallthru
      _
    // Predicated region
    $region38: #{tpu_custom_call.1} parent=1 // pred_check
      _
    $region39: #{tpu_custom_call.1} parent=1 // pred_check_branch
      %71 = sbr.rel (0) target = $region41
    $region40: #{tpu_custom_call.1} parent=1 // pred_region
      %s73 = ssub.s32 1024, 1024
      %74 = vsyncadd [#allocation10], %s73
      %s75 = sshll.u32 [#allocation9], 4
      %s76 = int_to_ptr.vmem [resolvable:$true] %s75
      %81 = dma.hbm_to_vmem [thread:$0]  %s9, 1024, %s76, [#allocation10], 64, 64, 4
    $region41: #{tpu_custom_call.1} parent=1 // pred_fallthru
      _
    // Predicated region
    $region42: #{tpu_custom_call.1} parent=1 // pred_check
      _
    $region43: #{tpu_custom_call.1} parent=1 // pred_check_branch
      %83 = sbr.rel (0) target = $region45
    $region44: #{tpu_custom_call.1} parent=1 // pred_region
      _
    $region45: #{tpu_custom_call.1} parent=1 // pred_fallthru
      _
    // Predicated region
    $region46: #{tpu_custom_call.1} parent=1 // pred_check
      _
    $region47: #{tpu_custom_call.1} parent=1 // pred_check_branch
      %85 = sbr.rel (0) target = $region49
    $region48: #{tpu_custom_call.1} parent=1 // pred_region
      %s87 = ssub.s32 1024, 1024
      %88 = vsyncadd [#allocation10], %s87
      %s89 = sshll.u32 [#allocation11], 4
      %s90 = int_to_ptr.vmem [resolvable:$true] %s89
      %95 = dma.hbm_to_vmem [thread:$0]  %s11, 1024, %s90, [#allocation10], 64, 64, 4
    $region49: #{tpu_custom_call.1} parent=1 // pred_fallthru
      _
    // Predicated region
    $region50: #{tpu_custom_call.1} parent=1 // pred_check
      _
    $region51: #{tpu_custom_call.1} parent=1 // pred_check_branch
      %97 = sbr.rel (0) target = $region53
    $region52: #{tpu_custom_call.1} parent=1 // pred_region
      _
    $region53: #{tpu_custom_call.1} parent=1 // pred_fallthru
      _
    // Predicated region
    $region54: #{tpu_custom_call.1} parent=1 // pred_check
      _
    $region55: #{tpu_custom_call.1} parent=1 // pred_check_branch
      %99 = sbr.rel (0) target = $region57
    $region56: #{tpu_custom_call.1} parent=1 // pred_region
      _
    $region57: #{tpu_custom_call.1} parent=1 // pred_fallthru
      _
    // Predicated region
    $region58: #{tpu_custom_call.1} parent=1 // pred_check
      _
    $region59: #{tpu_custom_call.1} parent=1 // pred_check_branch
      %101 = sbr.rel (0) target = $region61
    $region60: #{tpu_custom_call.1} parent=1 // pred_region
      _
    $region61: #{tpu_custom_call.1} parent=1 // pred_fallthru
      _
    // Predicated region
    $region62: #{tpu_custom_call.1} parent=1 // pred_check
      _
    $region63: #{tpu_custom_call.1} parent=1 // pred_check_branch
      %103 = sbr.rel (0) target = $region65
    $region64: #{tpu_custom_call.1} parent=1 // pred_region
      %104 = dma.done [#allocation4], 128
    $region65: #{tpu_custom_call.1} parent=1 // pred_fallthru
      _
    // Predicated region
    $region66: #{tpu_custom_call.1} parent=1 // pred_check
      _
    $region67: #{tpu_custom_call.1} parent=1 // pred_check_branch
      %106 = sbr.rel (0) target = $region69
    $region68: #{tpu_custom_call.1} parent=1 // pred_region
      %107 = dma.done [#allocation7], 128
    $region69: #{tpu_custom_call.1} parent=1 // pred_fallthru
      _
    // Predicated region
    $region70: #{tpu_custom_call.1} parent=1 // pred_check
      _
    $region71: #{tpu_custom_call.1} parent=1 // pred_check_branch
      %109 = sbr.rel (0) target = $region73
    $region72: #{tpu_custom_call.1} parent=1 // pred_region
      %110 = dma.done [#allocation7], 384
    $region73: #{tpu_custom_call.1} parent=1 // pred_fallthru
      _
    // Predicated region
    $region74: #{tpu_custom_call.1} parent=1 // pred_check
      _
    $region75: #{tpu_custom_call.1} parent=1 // pred_check_branch
      %112 = sbr.rel (0) target = $region77
    $region76: #{tpu_custom_call.1} parent=1 // pred_region
      %113 = dma.done [#allocation10], 1024
    $region77: #{tpu_custom_call.1} parent=1 // pred_fallthru
      _
    // Predicated region
    $region78: #{tpu_custom_call.1} parent=1 // pred_check
      _
    $region79: #{tpu_custom_call.1} parent=1 // pred_check_branch
      %115 = sbr.rel (0) target = $region81
    $region80: #{tpu_custom_call.1} parent=1 // pred_region
      %116 = dma.done [#allocation10], 1024
    $region81: #{tpu_custom_call.1} parent=1 // pred_fallthru
      _
    %v118 = vld [vmem:[#allocation3] sm:$0xff]
    %v119 = vld [vmem:[#allocation6] sm:$0xff]
    %vm120 = vcmask 392192
    %v121 = vsel %vm120, %v118, 0.0
    %122 = vadd.xlane.f32.xlu0 %v121
    %v123 = vpop.xlane.xlu0 %122
    %vm124 = vcmask 130048
    %v125 = vsel %vm124, %v119, 0.0
    %126 = vadd.xlane.f32.xlu0 %v125
    %v127 = vpop.xlane.xlu0 %126
    %v128 = vadd.f32 %v123, %v127
    %v129 = vmul.f32 %v118, %v118
    %v130 = vsel %vm120, %v129, 0.0
    %131 = vadd.xlane.f32.xlu0 %v130
    %v132 = vpop.xlane.xlu0 %131
    %v133 = vmul.f32 %v119, %v119
    %v134 = vsel %vm124, %v133, 0.0
    %135 = vadd.xlane.f32.xlu0 %v134
    %v136 = vpop.xlane.xlu0 %135
    %v137 = vadd.f32 %v132, %v136
    %v138 = vmul.f32 %v128, 0.015625
    %v139 = vmul.f32 %v137, 0.015625
    %v140 = vmul.f32 %v138, %v138
    %v141 = vsub.f32 %v139, %v140
    %v142 = vmax.f32 %v141, 0.0
    %v143 = vadd.f32 %v142, 1e-05
    %v144 = vrsqrt.pop %v143
    %v145 = vsub.f32 %v118, %v138
    %v146 = vmul.f32 %v145, %v144
    %v147 = vld [vmem:[%s2] sm:$0x1]
    %v149 = vlaneseq
    %v150 = vshrl.u32 %v149, 7
    %v151 = vsub.s32 0, %v150
    %v152 = vrot.slane %v147, %v151
    %v154 = vmul.f32 %v146, %v152
    %v155 = vld [vmem:[%s3] sm:$0x1]
    %v157 = vlaneseq
    %v158 = vshrl.u32 %v157, 7
    %v159 = vsub.s32 0, %v158
    %v160 = vrot.slane %v155, %v159
    %v162 = vadd.f32 %v154, %v160
    %v163 = vsub.f32 %v119, %v138
    %v164 = vmul.f32 %v163, %v144
    %v165 = vld [vmem:[%s4] sm:$0x1]
    %v167 = vlaneseq
    %v168 = vshrl.u32 %v167, 7
    %v169 = vsub.s32 0, %v168
    %v170 = vrot.slane %v165, %v169
    %v172 = vmul.f32 %v164, %v170
    %v173 = vld [vmem:[%s5] sm:$0x1]
    %v175 = vlaneseq
    %v176 = vshrl.u32 %v175, 7
    %v177 = vsub.s32 0, %v176
    %v178 = vrot.slane %v173, %v177
    %v180 = vadd.f32 %v172, %v178
    %v181 = vpack.c.bf16 %v162, %v162
    %v182 = vld [vmem:[#allocation8] sm:$0xf]
    %v183 = vld [vmem:[#allocation8 + $0x4] sm:$0xf]
    %v184 = vld [vmem:[#allocation8 + $0x8] sm:$0xf]
    %v185 = vld [vmem:[#allocation8 + $0xc] sm:$0xf]
    %v186 = vld [vmem:[#allocation8 + $0x10] sm:$0xf]
    %v187 = vld [vmem:[#allocation8 + $0x14] sm:$0xf]
    %v188 = vpack.c.bf16 %v180, %v180
    %v189 = vld [vmem:[%s7] sm:$0xf]
    %v190 = vld [vmem:[%s7 + $0x4] sm:$0xf]
    %v193 = vunpack.c.l.b16 %v189
    %v194 = vunpack.c.l.b16 %v190
    %v195 = vpack.c.b16 %v194, %v193
    %v198 = vsel %vm124, %v188, 0
    %200 = vmatprep.subr.bf16.mxu0 0
    %201 = vmatpush1.bf16.msra.mxu0 0
    %202 = vmatprep.subr.bf16.mxu0 0
    %203 = vmatpush1.bf16.msra.mxu0 0
    %204 = vmatprep.subr.bf16.mxu0 0
    %205 = vmatpush1.bf16.msra.mxu0 0
    %206 = vmatprep.subr.bf16.mxu0 0
    %207 = vmatpush1.bf16.msra.mxu0 0
    %208 = vmatprep.subr.bf16.mxu0 0
    %209 = vmatpush1.bf16.msra.mxu0 0
    %210 = vmatprep.subr.bf16.mxu0 0
    %211 = vmatpush1.bf16.msra.mxu0 0
    %212 = vmatprep.subr.bf16.mxu0 0
    %213 = vmatpush1.bf16.msra.mxu0 0
    %214 = vmatprep.subr.bf16.mxu0 0
    %215 = vmatpush1.bf16.msra.mxu0 %v195
    %216 = vmatprep.subr.bf16.mxu0 0
    %217 = vmatpush2.bf16.msra.mxu0 0
    %218 = vmatprep.subr.bf16.mxu0 0
    %219 = vmatpush2.bf16.msra.mxu0 0
    %220 = vmatprep.subr.bf16.mxu0 0
    %221 = vmatpush2.bf16.msra.mxu0 0
    %222 = vmatprep.subr.bf16.mxu0 0
    %223 = vmatpush2.bf16.msra.mxu0 0
    %224 = vmatprep.subr.bf16.mxu0 0
    %225 = vmatpush2.bf16.msra.mxu0 0
    %226 = vmatprep.subr.bf16.mxu0 0
    %227 = vmatpush2.bf16.msra.mxu0 0
    %228 = vmatprep.subr.bf16.mxu0 0
    %229 = vmatpush2.bf16.msra.mxu0 0
    %230 = vmatprep.subr.bf16.mxu0 0
    %231 = vmatpush2.bf16.msra.mxu0 0
    %232 = vmatprep.mubr.bf16.mxu0 0
    %233 = vmatmul.mubr.bf16.gmra.mxu0 %v198
    %v234 = vpop.f32.mrf.mxu0
    %v235 = vadd.f32 0.0, %v234
    %v236 = vpop.f32.mrf.mxu0
    %v237 = vpop.f32.mrf.mxu0
    %v238 = vpop.f32.mrf.mxu0
    %239 = vdwg.mxu0
    %v246 = vunpack.c.l.b16 %v182
    %v247 = vunpack.c.l.b16 %v183
    %v248 = vunpack.c.l.b16 %v184
    %v249 = vunpack.c.l.b16 %v185
    %v250 = vunpack.c.l.b16 %v186
    %v251 = vunpack.c.l.b16 %v187
    %v252 = vpack.c.b16 %v247, %v246
    %v253 = vpack.c.b16 %v249, %v248
    %v254 = vpack.c.b16 %v251, %v250
    %v259 = vsel %vm120, %v181, 0
    %261 = vmatprep.subr.bf16.mxu0 0
    %262 = vmatpush1.bf16.msra.mxu0 0
    %263 = vmatprep.subr.bf16.mxu0 0
    %264 = vmatpush1.bf16.msra.mxu0 0
    %265 = vmatprep.subr.bf16.mxu0 0
    %266 = vmatpush1.bf16.msra.mxu0 0
    %267 = vmatprep.subr.bf16.mxu0 0
    %268 = vmatpush1.bf16.msra.mxu0 0
    %269 = vmatprep.subr.bf16.mxu0 0
    %270 = vmatpush1.bf16.msra.mxu0 0
    %271 = vmatprep.subr.bf16.mxu0 0
    %272 = vmatpush1.bf16.msra.mxu0 %v254
    %273 = vmatprep.subr.bf16.mxu0 0
    %274 = vmatpush1.bf16.msra.mxu0 %v253
    %275 = vmatprep.subr.bf16.mxu0 0
    %276 = vmatpush1.bf16.msra.mxu0 %v252
    %277 = vmatprep.subr.bf16.mxu0 0
    %278 = vmatpush2.bf16.msra.mxu0 0
    %279 = vmatprep.subr.bf16.mxu0 0
    %280 = vmatpush2.bf16.msra.mxu0 0
    %281 = vmatprep.subr.bf16.mxu0 0
    %282 = vmatpush2.bf16.msra.mxu0 0
    %283 = vmatprep.subr.bf16.mxu0 0
    %284 = vmatpush2.bf16.msra.mxu0 0
    %285 = vmatprep.subr.bf16.mxu0 0
    %286 = vmatpush2.bf16.msra.mxu0 0
    %287 = vmatprep.subr.bf16.mxu0 0
    %288 = vmatpush2.bf16.msra.mxu0 0
    %289 = vmatprep.subr.bf16.mxu0 0
    %290 = vmatpush2.bf16.msra.mxu0 0
    %291 = vmatprep.subr.bf16.mxu0 0
    %292 = vmatpush2.bf16.msra.mxu0 0
    %293 = vmatprep.mubr.bf16.mxu0 0
    %294 = vmatmul.mubr.bf16.gmra.mxu0 %v259
    %v295 = vpop.f32.mrf.mxu0
    %v296 = vadd.f32 %v235, %v295
    %v297 = vpop.f32.mrf.mxu0
    %v298 = vpop.f32.mrf.mxu0
    %v299 = vpop.f32.mrf.mxu0
    %300 = vdwg.mxu0
    %v301 = vld [vmem:[%s8] sm:$0x1]
    %v303 = vlaneseq
    %v304 = vshrl.u32 %v303, 7
    %v305 = vsub.s32 0, %v304
    %v306 = vrot.slane %v301, %v305
    %v308 = vadd.f32 %v296, %v306
    %v309 = vmax.f32 %v308, 0.0
    %v310 = vpack.c.bf16 %v309, %v309
    %v311 = vld [vmem:[#allocation9] sm:$0xf]
    %v312 = vld [vmem:[#allocation9 + $0x4] sm:$0xf]
    %v313 = vld [vmem:[#allocation9 + $0x8] sm:$0xf]
    %v314 = vld [vmem:[#allocation9 + $0xc] sm:$0xf]
    %v315 = vld [vmem:[#allocation9 + $0x10] sm:$0xf]
    %v316 = vld [vmem:[#allocation9 + $0x14] sm:$0xf]
    %v317 = vld [vmem:[#allocation9 + $0x18] sm:$0xf]
    %v318 = vld [vmem:[#allocation9 + $0x1c] sm:$0xf]
    %v319 = vld [vmem:[#allocation9 + $0x20] sm:$0xf]
    %v320 = vld [vmem:[#allocation9 + $0x24] sm:$0xf]
    %v321 = vld [vmem:[#allocation9 + $0x28] sm:$0xf]
    %v322 = vld [vmem:[#allocation9 + $0x2c] sm:$0xf]
    %v323 = vld [vmem:[#allocation9 + $0x30] sm:$0xf]
    %v324 = vld [vmem:[#allocation9 + $0x34] sm:$0xf]
    %v325 = vld [vmem:[#allocation9 + $0x38] sm:$0xf]
    %v326 = vld [vmem:[#allocation9 + $0x3c] sm:$0xf]
    %v327 = vld [vmem:[%s10] sm:$0x1]
    %v329 = vlaneseq
    %v330 = vshrl.u32 %v329, 7
    %v331 = vsub.s32 0, %v330
    %v332 = vrot.slane %v327, %v331
    %v350 = vunpack.c.l.b16 %v311
    %v351 = vunpack.c.l.b16 %v312
    %v352 = vunpack.c.l.b16 %v313
    %v353 = vunpack.c.l.b16 %v314
    %v354 = vunpack.c.l.b16 %v315
    %v355 = vunpack.c.l.b16 %v316
    %v356 = vunpack.c.l.b16 %v317
    %v357 = vunpack.c.l.b16 %v318
    %v358 = vunpack.c.l.b16 %v319
    %v359 = vunpack.c.l.b16 %v320
    %v360 = vunpack.c.l.b16 %v321
    %v361 = vunpack.c.l.b16 %v322
    %v362 = vunpack.c.l.b16 %v323
    %v363 = vunpack.c.l.b16 %v324
    %v364 = vunpack.c.l.b16 %v325
    %v365 = vunpack.c.l.b16 %v326
    %v366 = vpack.c.b16 %v351, %v350
    %v367 = vpack.c.b16 %v353, %v352
    %v368 = vpack.c.b16 %v355, %v354
    %v369 = vpack.c.b16 %v357, %v356
    %v370 = vpack.c.b16 %v359, %v358
    %v371 = vpack.c.b16 %v361, %v360
    %v372 = vpack.c.b16 %v363, %v362
    %v373 = vpack.c.b16 %v365, %v364
    %382 = vmatprep.subr.bf16.mxu0 0
    %383 = vmatpush1.bf16.msra.mxu0 %v373
    %384 = vmatprep.subr.bf16.mxu0 0
    %385 = vmatpush1.bf16.msra.mxu0 %v372
    %386 = vmatprep.subr.bf16.mxu0 0
    %387 = vmatpush1.bf16.msra.mxu0 %v371
    %388 = vmatprep.subr.bf16.mxu0 0
    %389 = vmatpush1.bf16.msra.mxu0 %v370
    %390 = vmatprep.subr.bf16.mxu0 0
    %391 = vmatpush1.bf16.msra.mxu0 %v369
    %392 = vmatprep.subr.bf16.mxu0 0
    %393 = vmatpush1.bf16.msra.mxu0 %v368
    %394 = vmatprep.subr.bf16.mxu0 0
    %395 = vmatpush1.bf16.msra.mxu0 %v367
    %396 = vmatprep.subr.bf16.mxu0 0
    %397 = vmatpush1.bf16.msra.mxu0 %v366
    %398 = vmatprep.subr.bf16.mxu0 0
    %399 = vmatpush2.bf16.msra.mxu0 0
    %400 = vmatprep.subr.bf16.mxu0 0
    %401 = vmatpush2.bf16.msra.mxu0 0
    %402 = vmatprep.subr.bf16.mxu0 0
    %403 = vmatpush2.bf16.msra.mxu0 0
    %404 = vmatprep.subr.bf16.mxu0 0
    %405 = vmatpush2.bf16.msra.mxu0 0
    %406 = vmatprep.subr.bf16.mxu0 0
    %407 = vmatpush2.bf16.msra.mxu0 0
    %408 = vmatprep.subr.bf16.mxu0 0
    %409 = vmatpush2.bf16.msra.mxu0 0
    %410 = vmatprep.subr.bf16.mxu0 0
    %411 = vmatpush2.bf16.msra.mxu0 0
    %412 = vmatprep.subr.bf16.mxu0 0
    %413 = vmatpush2.bf16.msra.mxu0 0
    %414 = vmatprep.mubr.bf16.mxu0 0
    %415 = vmatmul.mubr.bf16.gmra.mxu0 %v310
    %v416 = vpop.f32.mrf.mxu0
    %v417 = vadd.f32 %v332, %v416
    %v418 = vpop.f32.mrf.mxu0
    %v419 = vpop.f32.mrf.mxu0
    %v420 = vpop.f32.mrf.mxu0
    %421 = vdwg.mxu0
    %v422 = vmax.f32 %v417, 0.0
    %v423 = vpack.c.bf16 %v422, %v422
    %v424 = vld [vmem:[#allocation11] sm:$0xf]
    %v425 = vld [vmem:[#allocation11 + $0x4] sm:$0xf]
    %v426 = vld [vmem:[#allocation11 + $0x8] sm:$0xf]
    %v427 = vld [vmem:[#allocation11 + $0xc] sm:$0xf]
    %v428 = vld [vmem:[#allocation11 + $0x10] sm:$0xf]
    %v429 = vld [vmem:[#allocation11 + $0x14] sm:$0xf]
    %v430 = vld [vmem:[#allocation11 + $0x18] sm:$0xf]
    %v431 = vld [vmem:[#allocation11 + $0x1c] sm:$0xf]
    %v432 = vld [vmem:[#allocation11 + $0x20] sm:$0xf]
    %v433 = vld [vmem:[#allocation11 + $0x24] sm:$0xf]
    %v434 = vld [vmem:[#allocation11 + $0x28] sm:$0xf]
    %v435 = vld [vmem:[#allocation11 + $0x2c] sm:$0xf]
    %v436 = vld [vmem:[#allocation11 + $0x30] sm:$0xf]
    %v437 = vld [vmem:[#allocation11 + $0x34] sm:$0xf]
    %v438 = vld [vmem:[#allocation11 + $0x38] sm:$0xf]
    %v439 = vld [vmem:[#allocation11 + $0x3c] sm:$0xf]
    %v440 = vld [vmem:[%s12] sm:$0x1]
    %v442 = vlaneseq
    %v443 = vshrl.u32 %v442, 7
    %v444 = vsub.s32 0, %v443
    %v445 = vrot.slane %v440, %v444
    %v463 = vunpack.c.l.b16 %v424
    %v464 = vunpack.c.l.b16 %v425
    %v465 = vunpack.c.l.b16 %v426
    %v466 = vunpack.c.l.b16 %v427
    %v467 = vunpack.c.l.b16 %v428
    %v468 = vunpack.c.l.b16 %v429
    %v469 = vunpack.c.l.b16 %v430
    %v470 = vunpack.c.l.b16 %v431
    %v471 = vunpack.c.l.b16 %v432
    %v472 = vunpack.c.l.b16 %v433
    %v473 = vunpack.c.l.b16 %v434
    %v474 = vunpack.c.l.b16 %v435
    %v475 = vunpack.c.l.b16 %v436
    %v476 = vunpack.c.l.b16 %v437
    %v477 = vunpack.c.l.b16 %v438
    %v478 = vunpack.c.l.b16 %v439
    %v479 = vpack.c.b16 %v464, %v463
    %v480 = vpack.c.b16 %v466, %v465
    %v481 = vpack.c.b16 %v468, %v467
    %v482 = vpack.c.b16 %v470, %v469
    %v483 = vpack.c.b16 %v472, %v471
    %v484 = vpack.c.b16 %v474, %v473
    %v485 = vpack.c.b16 %v476, %v475
    %v486 = vpack.c.b16 %v478, %v477
    %495 = vmatprep.subr.bf16.mxu0 0
    %496 = vmatpush1.bf16.msra.mxu0 %v486
    %497 = vmatprep.subr.bf16.mxu0 0
    %498 = vmatpush1.bf16.msra.mxu0 %v485
    %499 = vmatprep.subr.bf16.mxu0 0
    %500 = vmatpush1.bf16.msra.mxu0 %v484
    %501 = vmatprep.subr.bf16.mxu0 0
    %502 = vmatpush1.bf16.msra.mxu0 %v483
    %503 = vmatprep.subr.bf16.mxu0 0
    %504 = vmatpush1.bf16.msra.mxu0 %v482
    %505 = vmatprep.subr.bf16.mxu0 0
    %506 = vmatpush1.bf16.msra.mxu0 %v481
    %507 = vmatprep.subr.bf16.mxu0 0
    %508 = vmatpush1.bf16.msra.mxu0 %v480
    %509 = vmatprep.subr.bf16.mxu0 0
    %510 = vmatpush1.bf16.msra.mxu0 %v479
    %511 = vmatprep.subr.bf16.mxu0 0
    %512 = vmatpush2.bf16.msra.mxu0 0
    %513 = vmatprep.subr.bf16.mxu0 0
    %514 = vmatpush2.bf16.msra.mxu0 0
    %515 = vmatprep.subr.bf16.mxu0 0
    %516 = vmatpush2.bf16.msra.mxu0 0
    %517 = vmatprep.subr.bf16.mxu0 0
    %518 = vmatpush2.bf16.msra.mxu0 0
    %519 = vmatprep.subr.bf16.mxu0 0
    %520 = vmatpush2.bf16.msra.mxu0 0
    %521 = vmatprep.subr.bf16.mxu0 0
    %522 = vmatpush2.bf16.msra.mxu0 0
    %523 = vmatprep.subr.bf16.mxu0 0
    %524 = vmatpush2.bf16.msra.mxu0 0
    %525 = vmatprep.subr.bf16.mxu0 0
    %526 = vmatpush2.bf16.msra.mxu0 0
    %527 = vmatprep.mubr.bf16.mxu0 0
    %528 = vmatmul.mubr.bf16.gmra.mxu0 %v423
    %v529 = vpop.f32.mrf.mxu0
    %v530 = vadd.f32 %v445, %v529
    %v531 = vpop.f32.mrf.mxu0
    %v532 = vpop.f32.mrf.mxu0
    %v533 = vpop.f32.mrf.mxu0
    %534 = vdwg.mxu0
    %v535 = vmax.f32 %v530, 0.0
    %v536 = vld [vmem:[%s13] sm:$0x1]
    %v537 = vpack.c.bf16 %v535, %v535
    %v538 = vld [vmem:[#allocation2] sm:$0x1]
    %540 = vset.pattern.permute.xlu0 0
    %541 = vperm.xlu0 %540, %v538
    %v542 = vpop.permute.xlu0 %541
    %v544 = vlaneseq
    %v545 = vshrl.u32 %v544, 7
    %v546 = vsub.s32 0, %v545
    %v547 = vrot.slane %v542, %v546
    %548 = vmatprep.subr.bf16.mxu0 0
    %549 = vmatpush1.bf16.xpose.msra.mxu0 0
    %550 = vmatprep.subr.bf16.mxu0 0
    %551 = vmatpush1.bf16.xpose.msra.mxu0 0
    %552 = vmatprep.subr.bf16.mxu0 0
    %553 = vmatpush1.bf16.xpose.msra.mxu0 0
    %554 = vmatprep.subr.bf16.mxu0 0
    %555 = vmatpush1.bf16.xpose.msra.mxu0 0
    %556 = vmatprep.subr.bf16.mxu0 0
    %557 = vmatpush1.bf16.xpose.msra.mxu0 0
    %558 = vmatprep.subr.bf16.mxu0 0
    %559 = vmatpush1.bf16.xpose.msra.mxu0 0
    %560 = vmatprep.subr.bf16.mxu0 0
    %561 = vmatpush1.bf16.xpose.msra.mxu0 0
    %562 = vmatprep.subr.bf16.mxu0 0
    %563 = vmatpush1.bf16.xpose.msra.mxu0 %v537
    %564 = vmatprep.subr.bf16.mxu0 0
    %565 = vmatpush2.bf16.xpose.msra.mxu0 0
    %566 = vmatprep.subr.bf16.mxu0 0
    %567 = vmatpush2.bf16.xpose.msra.mxu0 0
    %568 = vmatprep.subr.bf16.mxu0 0
    %569 = vmatpush2.bf16.xpose.msra.mxu0 0
    %570 = vmatprep.subr.bf16.mxu0 0
    %571 = vmatpush2.bf16.xpose.msra.mxu0 0
    %572 = vmatprep.subr.bf16.mxu0 0
    %573 = vmatpush2.bf16.xpose.msra.mxu0 0
    %574 = vmatprep.subr.bf16.mxu0 0
    %575 = vmatpush2.bf16.xpose.msra.mxu0 0
    %576 = vmatprep.subr.bf16.mxu0 0
    %577 = vmatpush2.bf16.xpose.msra.mxu0 0
    %578 = vmatprep.subr.bf16.mxu0 0
    %579 = vmatpush2.bf16.xpose.msra.mxu0 0
    %580 = vmatprep.mubr.bf16.mxu0 0
    %581 = vmatmul.mubr.bf16.gmra.mxu0 %v536
    %v582 = vpop.f32.mrf.mxu0
    %v583 = vadd.f32 %v547, %v582
    %v584 = vpop.f32.mrf.mxu0
    %v585 = vpop.f32.mrf.mxu0
    %v586 = vpop.f32.mrf.mxu0
    %587 = vdwg.mxu0
    %vm588 = vcmask 57344
    %589 = vst.msk [vmem:[#allocation12] sm:$0x1] %vm588, %v583
    // Predicated region
    $region82: #{tpu_custom_call.1} parent=1 // pred_check
      _
    $region83: #{tpu_custom_call.1} parent=1 // pred_check_branch
      %591 = sbr.rel (0) target = $region85
    $region84: #{tpu_custom_call.1} parent=1 // pred_region
      %s593 = ssub.s32 16, 16
      %594 = vsyncadd [#allocation5], %s593
      %s596 = sshll.u32 [#allocation12], 4
      %s597 = int_to_ptr.vmem [resolvable:$true] %s596
      %599 = dma.vmem_to_hbm [thread:$0]  %s597, 16, %s15, [#allocation5]
    $region85: #{tpu_custom_call.1} parent=1 // pred_fallthru
      _
    // Predicated region
    $region86: #{tpu_custom_call.1} parent=1 // pred_check
      _
    $region87: #{tpu_custom_call.1} parent=1 // pred_check_branch
      %601 = sbr.rel (0) target = $region89
    $region88: #{tpu_custom_call.1} parent=1 // pred_region
      %602 = dma.done [#allocation5], 16
    $region89: #{tpu_custom_call.1} parent=1 // pred_fallthru
      _
    %603 = vsyncpa [#allocation4], 1
    %604 = vsyncpa [#allocation7], 1
    %605 = vsyncpa [#allocation10], 1
    %606 = vsyncpa [#allocation5], 1

</llo_original>
